<compile_context>
chip_gen: v6e
topology: v6e:2x2x1
jax: 0.10.0
libtpu: 0.0.40
codegen_flags: <defaults>
</compile_context>

<pallas_src>
import math

import jax
import jax.numpy as jnp
from jax.experimental import pallas as pl
from jax.experimental.pallas import tpu as pltpu

# ----------------------------- tiny BERT config ------------------------------
VOCAB = 99
TYPE_VOCAB = 2
MAX_POS = 32
HIDDEN = 32
N_HEADS = 2
HEAD_DIM = HIDDEN // N_HEADS
INTERMEDIATE = 64
N_LAYERS = 2
LN_EPS = 1e-12

BATCH = 2
SEQ = 8


# ------------------------------ shared math -----------------------------------
def _layer_norm(x, gamma, beta):
    mean = jnp.mean(x, axis=-1, keepdims=True)
    var = jnp.mean((x - mean) ** 2, axis=-1, keepdims=True)
    return (x - mean) * jax.lax.rsqrt(var + LN_EPS) * gamma + beta


# ------------------------------ fused kernel ----------------------------------
def _encoder_kernel(emb_ref, bias_ref, gvecs_ref,
                    wqkv_ref, bqkv_ref, wo_ref, wi_ref, bi_ref, wo2_ref,
                    lvecs_ref, pw_ref,
                    hid_ref, pool_ref):
    """Whole encoder (all batches, all layers, pooler) in one grid step."""
    # Embedding LayerNorm seeds the (B*S, H) f32 hidden slab.
    h = _layer_norm(emb_ref[...].astype(jnp.float32),
                    gvecs_ref[0:1, :], gvecs_ref[1:2, :])
    bias = bias_ref[...]                       # (B*S, B*S): 0 / -1e9 (pad + block-diag)

    for l in range(N_LAYERS):                  # static unrolled layer loop
        lv = lvecs_ref[l]                      # (6, H) packed per-layer vectors
        bo, ln1g, ln1b = lv[0:1], lv[1:2], lv[2:3]
        bo2, ln2g, ln2b = lv[3:4], lv[4:5], lv[5:6]

        # ---- self-attention: fused QKV matmul (1/sqrt(d) folded into Wq/bq) ----
        qkv = jnp.dot(h.astype(jnp.bfloat16), wqkv_ref[l],
                      preferred_element_type=jnp.float32) + bqkv_ref[l]   # (BS, 3H)

        attn = jnp.zeros(h.shape, jnp.float32)
        for hh in range(N_HEADS):
            lo, hi = hh * HEAD_DIM, (hh + 1) * HEAD_DIM
            q = qkv[:, lo:hi]                                             # (BS, dH)
            k = qkv[:, HIDDEN + lo:HIDDEN + hi]
            v = qkv[:, 2 * HIDDEN + lo:2 * HIDDEN + hi]
            s = jax.lax.dot_general(q, k, (((1,), (1,)), ((), ())),
                                    preferred_element_type=jnp.float32)   # (BS, BS)
            s = s + bias
            s = s - jnp.max(s, axis=-1, keepdims=True)
            e = jnp.exp(s)
            p = e * pl.reciprocal(jnp.sum(e, axis=-1, keepdims=True), approx=True)
            ctx = jnp.dot(p, v, preferred_element_type=jnp.float32)       # (BS, dH)
            # Fold the per-head output projection in directly (no lane concat).
            attn = attn + jnp.dot(ctx.astype(jnp.bfloat16), wo_ref[l, lo:hi, :],
                                  preferred_element_type=jnp.float32)
        h1 = _layer_norm(attn + bo + h, ln1g, ln1b)

        # ---- feed-forward ----
        inter = jnp.dot(h1.astype(jnp.bfloat16), wi_ref[l],
                        preferred_element_type=jnp.float32) + bi_ref[l]
        # TODO(synk): HF BERT default is the exact erf GELU; tanh approximation is
        #             used here for TPU-friendly lowering (tiny numerical deviation).
        inter = jax.nn.gelu(inter, approximate=True)
        ffn = jnp.dot(inter.astype(jnp.bfloat16), wo2_ref[l],
                      preferred_element_type=jnp.float32) + bo2
        h = _layer_norm(ffn + h1, ln2g, ln2b)

    # ---- single writeback of the final hidden slab ----
    hid_ref[...] = h.astype(hid_ref.dtype)

    # ---- pooler on the CLS rows (once, after the layer loop) ----
    cls = jnp.concatenate([h[b * SEQ:b * SEQ + 1, :] for b in range(BATCH)],
                          axis=0)                                          # (B, H)
    pooled = jnp.tanh(jnp.dot(cls.astype(jnp.bfloat16), pw_ref[...],
                              preferred_element_type=jnp.float32)
                      + gvecs_ref[2:3, :])
    pool_ref[...] = pooled.astype(pool_ref.dtype)


# ------------------------------ wrapper / glue ---------------------------------
def _stack_layers(layers):
    """Stack per-layer params on a layer axis; fuse QKV; fold scale; bf16 weights."""
    scale = 1.0 / math.sqrt(HEAD_DIM)
    wqkv = jnp.stack([jnp.concatenate([p["wq"] * scale, p["wk"], p["wv"]], axis=-1)
                      for p in layers]).astype(jnp.bfloat16)               # (L, H, 3H)
    bqkv = jnp.stack([jnp.concatenate([p["bq"] * scale, p["bk"], p["bv"]])
                      .reshape(1, 3 * HIDDEN) for p in layers])            # (L, 1, 3H)
    wo = jnp.stack([p["wo"] for p in layers]).astype(jnp.bfloat16)         # (L, H, H)
    wi = jnp.stack([p["wi"] for p in layers]).astype(jnp.bfloat16)         # (L, H, I)
    bi = jnp.stack([p["bi"].reshape(1, INTERMEDIATE) for p in layers])     # (L, 1, I)
    wo2 = jnp.stack([p["wo2"] for p in layers]).astype(jnp.bfloat16)       # (L, I, H)
    # Pack the six (H,) per-layer vectors into one slab: fewer tiny DMAs.
    lvecs = jnp.stack([jnp.stack([p["bo"], p["ln1_g"], p["ln1_b"],
                                  p["bo2"], p["ln2_g"], p["ln2_b"]])
                       for p in layers])                                   # (L, 6, H)
    return wqkv, bqkv, wo, wi, bi, wo2, lvecs


def _full_spec(shape):
    """Whole-array VMEM-resident block for the single-step grid."""
    zeros = (0,) * len(shape)

    def imap(i):
        return zeros

    return pl.BlockSpec(tuple(shape), imap)


def seq_encoder_forward(params, input_ids, attention_mask):
    """Mirrors SeqEncoder.forward: returns (last_hidden_state, pooler_output)."""
    B, S = input_ids.shape

    # Embedding gathers are plain-JAX glue; everything downstream is one kernel.
    word = params["word_emb"][input_ids]                        # (B, S, H)
    pos = jnp.broadcast_to(params["pos_emb"][:S][None], (B, S, HIDDEN))
    typ = params["type_emb"][jnp.zeros((B, S), jnp.int32)]      # (B, S, H)
    emb = (word + pos + typ).reshape(B * S, HIDDEN).astype(jnp.float32)

    # Block-diagonal additive bias over the batch-folded (B*S, B*S) score matrix:
    # 0 where (same batch AND key attended), -1e9 elsewhere (padding / cross-batch).
    mask = attention_mask.astype(jnp.float32)                   # (B, S)
    eye = jnp.eye(B, dtype=jnp.float32)
    allowed = eye[:, None, :, None] * mask[None, None, :, :]    # (B, 1, B, S)
    allowed = jnp.broadcast_to(allowed, (B, S, B, S)).reshape(B * S, B * S)
    attn_bias = (allowed - 1.0) * 1e9

    wqkv, bqkv, wo, wi, bi, wo2, lvecs = _stack_layers(params["layers"])
    gvecs = jnp.stack([params["emb_ln_g"], params["emb_ln_b"],
                       params["pool_b"]])                       # (3, H)
    pool_w = params["pool_w"].astype(jnp.bfloat16)

    inputs = (emb, attn_bias, gvecs, wqkv, bqkv, wo, wi, bi, wo2, lvecs, pool_w)
    in_specs = [_full_spec(x.shape) for x in inputs]
    out_specs = (_full_spec((B * S, HIDDEN)), _full_spec((B, HIDDEN)))

    # Single grid step: every operand DMA'd exactly once, all weights VMEM-resident
    # (~50 KB total), zero repeated pipeline setup.  (On v7x one could instead use
    # grid=(B,) "parallel" to split batches across the two TensorCores.)
    hid, pool = pl.pallas_call(
        _encoder_kernel,
        out_shape=(jax.ShapeDtypeStruct((B * S, HIDDEN), jnp.float32),
                   jax.ShapeDtypeStruct((B, HIDDEN), jnp.float32)),
        grid=(1,),
        in_specs=in_specs,
        out_specs=out_specs,
        compiler_params=pltpu.CompilerParams(
            dimension_semantics=("arbitrary",)),
    )(*inputs)

    return hid.reshape(B, S, HIDDEN), pool


# --------------------------- pure-JAX reference --------------------------------
def _reference_forward(params, input_ids, attention_mask):
    B, S = input_ids.shape
    word = params["word_emb"][input_ids]
    pos = jnp.broadcast_to(params["pos_emb"][:S][None], (B, S, HIDDEN))
    typ = params["type_emb"][jnp.zeros((B, S), jnp.int32)]
    h = _layer_norm(word + pos + typ, params["emb_ln_g"], params["emb_ln_b"])
    bias = ((attention_mask.astype(jnp.float32) - 1.0) * 1e9)[:, None, None, :]

    def split(t):
        return t.reshape(B, S, N_HEADS, HEAD_DIM).transpose(0, 2, 1, 3)

    for p in params["layers"]:
        q, k, v = (h @ p["wq"] + p["bq"], h @ p["wk"] + p["bk"],
                   h @ p["wv"] + p["bv"])
        qh, kh, vh = split(q), split(k), split(v)
        sc = jnp.einsum("bhqd,bhkd->bhqk", qh, kh) / math.sqrt(HEAD_DIM) + bias
        pr = jax.nn.softmax(sc, axis=-1)
        ctx = jnp.einsum("bhqk,bhkd->bhqd", pr, vh)
        ctx = ctx.transpose(0, 2, 1, 3).reshape(B, S, HIDDEN)
        h1 = _layer_norm(ctx @ p["wo"] + p["bo"] + h, p["ln1_g"], p["ln1_b"])
        inter = jax.nn.gelu(h1 @ p["wi"] + p["bi"], approximate=True)
        h = _layer_norm(inter @ p["wo2"] + p["bo2"] + h1, p["ln2_g"], p["ln2_b"])
    pooled = jnp.tanh(h[:, 0, :] @ params["pool_w"] + params["pool_b"])
    return h, pooled


# ------------------------------ param init -------------------------------------
def init_params(key):
    def normal(k, shape):
        return jax.random.normal(k, shape, jnp.float32) * 0.02

    keys = jax.random.split(key, 4 + N_LAYERS)
    params = {
        "word_emb": normal(keys[0], (VOCAB, HIDDEN)),
        "pos_emb": normal(keys[1], (MAX_POS, HIDDEN)),
        "type_emb": normal(keys[2], (TYPE_VOCAB, HIDDEN)),
        "emb_ln_g": jnp.ones((HIDDEN,), jnp.float32),
        "emb_ln_b": jnp.zeros((HIDDEN,), jnp.float32),
        "pool_w": normal(keys[3], (HIDDEN, HIDDEN)),
        "pool_b": jnp.zeros((HIDDEN,), jnp.float32),
        "layers": [],
    }
    for l in range(N_LAYERS):
        lk = jax.random.split(keys[4 + l], 6)
        params["layers"].append({
            "wq": normal(lk[0], (HIDDEN, HIDDEN)), "bq": jnp.zeros((HIDDEN,)),
            "wk": normal(lk[1], (HIDDEN, HIDDEN)), "bk": jnp.zeros((HIDDEN,)),
            "wv": normal(lk[2], (HIDDEN, HIDDEN)), "bv": jnp.zeros((HIDDEN,)),
            "wo": normal(lk[3], (HIDDEN, HIDDEN)), "bo": jnp.zeros((HIDDEN,)),
            "ln1_g": jnp.ones((HIDDEN,)), "ln1_b": jnp.zeros((HIDDEN,)),
            "wi": normal(lk[4], (HIDDEN, INTERMEDIATE)),
            "bi": jnp.zeros((INTERMEDIATE,)),
            "wo2": normal(lk[5], (INTERMEDIATE, HIDDEN)),
            "bo2": jnp.zeros((HIDDEN,)),
            "ln2_g": jnp.ones((HIDDEN,)), "ln2_b": jnp.zeros((HIDDEN,)),
        })
    return params


# ----------------------------------- main ---------------------------------------
if __name__ == "__main__":
    key = jax.random.PRNGKey(0)
    pkey, dkey = jax.random.split(key)

    params = init_params(pkey)
    input_ids = jax.random.randint(dkey, (BATCH, SEQ), 0, VOCAB, dtype=jnp.int32)
    # second example has the last two tokens padded out
    attention_mask = jnp.ones((BATCH, SEQ), jnp.int32).at[1, 6:].set(0)

    fwd = jax.jit(seq_encoder_forward)
    last_hidden_state, pooler_output = fwd(params, input_ids, attention_mask)
    jax.block_until_ready((last_hidden_state, pooler_output))

    assert last_hidden_state.shape == (BATCH, SEQ, HIDDEN)
    assert pooler_output.shape == (BATCH, HIDDEN)
    assert bool(jnp.all(jnp.isfinite(last_hidden_state)))
    assert bool(jnp.all(jnp.isfinite(pooler_output)))

    # correctness vs. pure-JAX f32 reference (bf16 weights + approx reciprocal
    # softmax -> slightly loose tolerance)
    ref_hid, ref_pool = _reference_forward(params, input_ids, attention_mask)
    assert float(jnp.max(jnp.abs(last_hidden_state - ref_hid))) < 3e-2
    assert float(jnp.max(jnp.abs(pooler_output - ref_pool))) < 3e-2

    print("KERNEL_OK")
</pallas_src>

<mosaic_0001>
module attributes {stable_mosaic.version = 11 : i64} {
  func.func @_encoder_kernel(%arg0: i32, %arg1: memref<16x32xf32, #tpu.memory_space<vmem>>, %arg2: memref<16x16xf32, #tpu.memory_space<vmem>>, %arg3: memref<3x32xf32, #tpu.memory_space<vmem>>, %arg4: memref<2x32x96xbf16, #tpu.memory_space<vmem>>, %arg5: memref<2x1x96xf32, #tpu.memory_space<vmem>>, %arg6: memref<2x32x32xbf16, #tpu.memory_space<vmem>>, %arg7: memref<2x32x64xbf16, #tpu.memory_space<vmem>>, %arg8: memref<2x1x64xf32, #tpu.memory_space<vmem>>, %arg9: memref<2x64x32xbf16, #tpu.memory_space<vmem>>, %arg10: memref<2x6x32xf32, #tpu.memory_space<vmem>>, %arg11: memref<32x32xbf16, #tpu.memory_space<vmem>>, %arg12: memref<16x32xf32, #tpu.memory_space<vmem>>, %arg13: memref<2x32xf32, #tpu.memory_space<vmem>>) attributes {dimension_semantics = [#tpu.dimension_semantics<arbitrary>], iteration_bounds = array<i64: 1>, scalar_prefetch = 0 : i64, scratch_operands = 0 : i64, tpu.core_type = #tpu.core_type<tc>, window_params = [{pipeline_mode = #tpu.pipeline_mode<synchronous>, transform_indices = @transform_0, window_bounds = array<i64: 16, 32>}, {pipeline_mode = #tpu.pipeline_mode<synchronous>, transform_indices = @transform_1, window_bounds = array<i64: 16, 16>}, {pipeline_mode = #tpu.pipeline_mode<synchronous>, transform_indices = @transform_2, window_bounds = array<i64: 3, 32>}, {pipeline_mode = #tpu.pipeline_mode<synchronous>, transform_indices = @transform_3, window_bounds = array<i64: 2, 32, 96>}, {pipeline_mode = #tpu.pipeline_mode<synchronous>, transform_indices = @transform_4, window_bounds = array<i64: 2, 1, 96>}, {pipeline_mode = #tpu.pipeline_mode<synchronous>, transform_indices = @transform_5, window_bounds = array<i64: 2, 32, 32>}, {pipeline_mode = #tpu.pipeline_mode<synchronous>, transform_indices = @transform_6, window_bounds = array<i64: 2, 32, 64>}, {pipeline_mode = #tpu.pipeline_mode<synchronous>, transform_indices = @transform_7, window_bounds = array<i64: 2, 1, 64>}, {pipeline_mode = #tpu.pipeline_mode<synchronous>, transform_indices = @transform_8, window_bounds = array<i64: 2, 64, 32>}, {pipeline_mode = #tpu.pipeline_mode<synchronous>, transform_indices = @transform_9, window_bounds = array<i64: 2, 6, 32>}, {pipeline_mode = #tpu.pipeline_mode<synchronous>, transform_indices = @transform_10, window_bounds = array<i64: 32, 32>}, {pipeline_mode = #tpu.pipeline_mode<synchronous>, transform_indices = @transform_11, window_bounds = array<i64: 16, 32>}, {pipeline_mode = #tpu.pipeline_mode<synchronous>, transform_indices = @transform_12, window_bounds = array<i64: 2, 32>}]} {
    %c0 = arith.constant 0 : index
    %c0_0 = arith.constant 0 : index
    %0 = vector.load %arg1[%c0, %c0_0] : memref<16x32xf32, #tpu.memory_space<vmem>>, vector<16x32xf32>
    %c0_1 = arith.constant 0 : index
    %c0_2 = arith.constant 0 : index
    %1 = vector.load %arg3[%c0_1, %c0_2] : memref<3x32xf32, #tpu.memory_space<vmem>>, vector<1x32xf32>
    %c1 = arith.constant 1 : index
    %c0_3 = arith.constant 0 : index
    %2 = vector.load %arg3[%c1, %c0_3] : memref<3x32xf32, #tpu.memory_space<vmem>>, vector<1x32xf32>
    %cst = arith.constant dense<0.000000e+00> : vector<16xf32>
    %3 = vector.multi_reduction <add>, %0, %cst [1] : vector<16x32xf32> to vector<16xf32>
    %4 = vector.shape_cast %3 : vector<16xf32> to vector<16x1xf32>
    %cst_4 = arith.constant 3.200000e+01 : f32
    %5 = vector.broadcast %cst_4 : f32 to vector<16x1xf32>
    %6 = arith.divf %4, %5 : vector<16x1xf32>
    %7 = vector.broadcast %6 : vector<16x1xf32> to vector<16x32xf32>
    %8 = arith.subf %0, %7 : vector<16x32xf32>
    %9 = arith.mulf %8, %8 : vector<16x32xf32>
    %cst_5 = arith.constant dense<0.000000e+00> : vector<16xf32>
    %10 = vector.multi_reduction <add>, %9, %cst_5 [1] : vector<16x32xf32> to vector<16xf32>
    %11 = vector.shape_cast %10 : vector<16xf32> to vector<16x1xf32>
    %cst_6 = arith.constant 3.200000e+01 : f32
    %12 = vector.broadcast %cst_6 : f32 to vector<16x1xf32>
    %13 = arith.divf %11, %12 : vector<16x1xf32>
    %14 = vector.broadcast %6 : vector<16x1xf32> to vector<16x32xf32>
    %15 = arith.subf %0, %14 : vector<16x32xf32>
    %cst_7 = arith.constant 9.99999996E-13 : f32
    %16 = vector.broadcast %cst_7 : f32 to vector<16x1xf32>
    %17 = arith.addf %13, %16 : vector<16x1xf32>
    %18 = math.rsqrt %17 : vector<16x1xf32>
    %19 = vector.broadcast %18 : vector<16x1xf32> to vector<16x32xf32>
    %20 = arith.mulf %15, %19 : vector<16x32xf32>
    %21 = vector.broadcast %1 : vector<1x32xf32> to vector<16x32xf32>
    %22 = arith.mulf %20, %21 : vector<16x32xf32>
    %23 = vector.broadcast %2 : vector<1x32xf32> to vector<16x32xf32>
    %24 = arith.addf %22, %23 : vector<16x32xf32>
    %c0_8 = arith.constant 0 : index
    %c0_9 = arith.constant 0 : index
    %25 = vector.load %arg2[%c0_8, %c0_9] : memref<16x16xf32, #tpu.memory_space<vmem>>, vector<16x16xf32>
    %c0_10 = arith.constant 0 : index
    %c0_11 = arith.constant 0 : index
    %c0_12 = arith.constant 0 : index
    %26 = vector.load %arg10[%c0_10, %c0_11, %c0_12] : memref<2x6x32xf32, #tpu.memory_space<vmem>>, vector<1x6x32xf32>
    %27 = vector.shape_cast %26 : vector<1x6x32xf32> to vector<6x32xf32>
    %28 = vector.extract_strided_slice %27 {offsets = [0, 0], sizes = [1, 32], strides = [1, 1]} : vector<6x32xf32> to vector<1x32xf32>
    %29 = vector.extract_strided_slice %27 {offsets = [1, 0], sizes = [1, 32], strides = [1, 1]} : vector<6x32xf32> to vector<1x32xf32>
    %30 = vector.extract_strided_slice %27 {offsets = [2, 0], sizes = [1, 32], strides = [1, 1]} : vector<6x32xf32> to vector<1x32xf32>
    %31 = vector.extract_strided_slice %27 {offsets = [3, 0], sizes = [1, 32], strides = [1, 1]} : vector<6x32xf32> to vector<1x32xf32>
    %32 = vector.extract_strided_slice %27 {offsets = [4, 0], sizes = [1, 32], strides = [1, 1]} : vector<6x32xf32> to vector<1x32xf32>
    %33 = vector.extract_strided_slice %27 {offsets = [5, 0], sizes = [1, 32], strides = [1, 1]} : vector<6x32xf32> to vector<1x32xf32>
    %34 = arith.truncf %24 : vector<16x32xf32> to vector<16x32xbf16>
    %c0_13 = arith.constant 0 : index
    %c0_14 = arith.constant 0 : index
    %c0_15 = arith.constant 0 : index
    %35 = vector.load %arg4[%c0_13, %c0_14, %c0_15] : memref<2x32x96xbf16, #tpu.memory_space<vmem>>, vector<1x32x96xbf16>
    %36 = vector.shape_cast %35 : vector<1x32x96xbf16> to vector<32x96xbf16>
    %cst_16 = arith.constant dense<0.000000e+00> : vector<16x96xf32>
    %37 = tpu.matmul %34, %36, %cst_16 {dimension_numbers = #tpu.dot_dimension_numbers<[1], [0], [0], [1], [0, 0, 1, 1], [], []>} : vector<16x32xbf16>, vector<32x96xbf16>, vector<16x96xf32> -> vector<16x96xf32>
    %c0_17 = arith.constant 0 : index
    %c0_18 = arith.constant 0 : index
    %c0_19 = arith.constant 0 : index
    %38 = vector.load %arg5[%c0_17, %c0_18, %c0_19] : memref<2x1x96xf32, #tpu.memory_space<vmem>>, vector<1x1x96xf32>
    %39 = vector.shape_cast %38 : vector<1x1x96xf32> to vector<1x96xf32>
    %40 = vector.broadcast %39 : vector<1x96xf32> to vector<16x96xf32>
    %41 = arith.addf %37, %40 : vector<16x96xf32>
    %cst_20 = arith.constant 0.000000e+00 : f32
    %42 = vector.broadcast %cst_20 : f32 to vector<16x32xf32>
    %43 = vector.extract_strided_slice %41 {offsets = [0, 0], sizes = [16, 16], strides = [1, 1]} : vector<16x96xf32> to vector<16x16xf32>
    %44 = vector.extract_strided_slice %41 {offsets = [0, 32], sizes = [16, 16], strides = [1, 1]} : vector<16x96xf32> to vector<16x16xf32>
    %45 = vector.extract_strided_slice %41 {offsets = [0, 64], sizes = [16, 16], strides = [1, 1]} : vector<16x96xf32> to vector<16x16xf32>
    %cst_21 = arith.constant dense<0.000000e+00> : vector<16x16xf32>
    %46 = tpu.matmul %43, %44, %cst_21 {dimension_numbers = #tpu.dot_dimension_numbers<[1], [1], [0], [0], [0, 0, 1, 0], [], []>} : vector<16x16xf32>, vector<16x16xf32>, vector<16x16xf32> -> vector<16x16xf32>
    %47 = arith.addf %46, %25 : vector<16x16xf32>
    %cst_22 = arith.constant dense<0xFF800000> : vector<16xf32>
    %48 = vector.multi_reduction <maximumf>, %47, %cst_22 [1] : vector<16x16xf32> to vector<16xf32>
    %49 = vector.shape_cast %48 : vector<16xf32> to vector<16x1xf32>
    %50 = vector.broadcast %49 : vector<16x1xf32> to vector<16x16xf32>
    %51 = arith.subf %47, %50 : vector<16x16xf32>
    %52 = math.exp %51 : vector<16x16xf32>
    %cst_23 = arith.constant dense<0.000000e+00> : vector<16xf32>
    %53 = vector.multi_reduction <add>, %52, %cst_23 [1] : vector<16x16xf32> to vector<16xf32>
    %54 = vector.shape_cast %53 : vector<16xf32> to vector<16x1xf32>
    %55 = tpu.reciprocal %54 {approx = true} : vector<16x1xf32> -> vector<16x1xf32>
    %56 = vector.broadcast %55 : vector<16x1xf32> to vector<16x16xf32>
    %57 = arith.mulf %52, %56 : vector<16x16xf32>
    %cst_24 = arith.constant dense<0.000000e+00> : vector<16x16xf32>
    %58 = tpu.matmul %57, %45, %cst_24 {dimension_numbers = #tpu.dot_dimension_numbers<[1], [0], [0], [1], [0, 0, 1, 1], [], []>} : vector<16x16xf32>, vector<16x16xf32>, vector<16x16xf32> -> vector<16x16xf32>
    %59 = arith.truncf %58 : vector<16x16xf32> to vector<16x16xbf16>
    %c0_25 = arith.constant 0 : index
    %c0_26 = arith.constant 0 : index
    %c0_27 = arith.constant 0 : index
    %60 = vector.load %arg6[%c0_25, %c0_26, %c0_27] : memref<2x32x32xbf16, #tpu.memory_space<vmem>>, vector<1x16x32xbf16>
    %61 = vector.shape_cast %60 : vector<1x16x32xbf16> to vector<16x32xbf16>
    %cst_28 = arith.constant dense<0.000000e+00> : vector<16x32xf32>
    %62 = tpu.matmul %59, %61, %cst_28 {dimension_numbers = #tpu.dot_dimension_numbers<[1], [0], [0], [1], [0, 0, 1, 1], [], []>} : vector<16x16xbf16>, vector<16x32xbf16>, vector<16x32xf32> -> vector<16x32xf32>
    %63 = arith.addf %42, %62 : vector<16x32xf32>
    %64 = vector.extract_strided_slice %41 {offsets = [0, 16], sizes = [16, 16], strides = [1, 1]} : vector<16x96xf32> to vector<16x16xf32>
    %65 = vector.extract_strided_slice %41 {offsets = [0, 48], sizes = [16, 16], strides = [1, 1]} : vector<16x96xf32> to vector<16x16xf32>
    %66 = vector.extract_strided_slice %41 {offsets = [0, 80], sizes = [16, 16], strides = [1, 1]} : vector<16x96xf32> to vector<16x16xf32>
    %cst_29 = arith.constant dense<0.000000e+00> : vector<16x16xf32>
    %67 = tpu.matmul %64, %65, %cst_29 {dimension_numbers = #tpu.dot_dimension_numbers<[1], [1], [0], [0], [0, 0, 1, 0], [], []>} : vector<16x16xf32>, vector<16x16xf32>, vector<16x16xf32> -> vector<16x16xf32>
    %68 = arith.addf %67, %25 : vector<16x16xf32>
    %cst_30 = arith.constant dense<0xFF800000> : vector<16xf32>
    %69 = vector.multi_reduction <maximumf>, %68, %cst_30 [1] : vector<16x16xf32> to vector<16xf32>
    %70 = vector.shape_cast %69 : vector<16xf32> to vector<16x1xf32>
    %71 = vector.broadcast %70 : vector<16x1xf32> to vector<16x16xf32>
    %72 = arith.subf %68, %71 : vector<16x16xf32>
    %73 = math.exp %72 : vector<16x16xf32>
    %cst_31 = arith.constant dense<0.000000e+00> : vector<16xf32>
    %74 = vector.multi_reduction <add>, %73, %cst_31 [1] : vector<16x16xf32> to vector<16xf32>
    %75 = vector.shape_cast %74 : vector<16xf32> to vector<16x1xf32>
    %76 = tpu.reciprocal %75 {approx = true} : vector<16x1xf32> -> vector<16x1xf32>
    %77 = vector.broadcast %76 : vector<16x1xf32> to vector<16x16xf32>
    %78 = arith.mulf %73, %77 : vector<16x16xf32>
    %cst_32 = arith.constant dense<0.000000e+00> : vector<16x16xf32>
    %79 = tpu.matmul %78, %66, %cst_32 {dimension_numbers = #tpu.dot_dimension_numbers<[1], [0], [0], [1], [0, 0, 1, 1], [], []>} : vector<16x16xf32>, vector<16x16xf32>, vector<16x16xf32> -> vector<16x16xf32>
    %80 = arith.truncf %79 : vector<16x16xf32> to vector<16x16xbf16>
    %c0_33 = arith.constant 0 : index
    %c16 = arith.constant 16 : index
    %c0_34 = arith.constant 0 : index
    %81 = vector.load %arg6[%c0_33, %c16, %c0_34] : memref<2x32x32xbf16, #tpu.memory_space<vmem>>, vector<1x16x32xbf16>
    %82 = vector.shape_cast %81 : vector<1x16x32xbf16> to vector<16x32xbf16>
    %cst_35 = arith.constant dense<0.000000e+00> : vector<16x32xf32>
    %83 = tpu.matmul %80, %82, %cst_35 {dimension_numbers = #tpu.dot_dimension_numbers<[1], [0], [0], [1], [0, 0, 1, 1], [], []>} : vector<16x16xbf16>, vector<16x32xbf16>, vector<16x32xf32> -> vector<16x32xf32>
    %84 = arith.addf %63, %83 : vector<16x32xf32>
    %85 = vector.broadcast %28 : vector<1x32xf32> to vector<16x32xf32>
    %86 = arith.addf %84, %85 : vector<16x32xf32>
    %87 = arith.addf %86, %24 : vector<16x32xf32>
    %cst_36 = arith.constant dense<0.000000e+00> : vector<16xf32>
    %88 = vector.multi_reduction <add>, %87, %cst_36 [1] : vector<16x32xf32> to vector<16xf32>
    %89 = vector.shape_cast %88 : vector<16xf32> to vector<16x1xf32>
    %cst_37 = arith.constant 3.200000e+01 : f32
    %90 = vector.broadcast %cst_37 : f32 to vector<16x1xf32>
    %91 = arith.divf %89, %90 : vector<16x1xf32>
    %92 = vector.broadcast %91 : vector<16x1xf32> to vector<16x32xf32>
    %93 = arith.subf %87, %92 : vector<16x32xf32>
    %94 = arith.mulf %93, %93 : vector<16x32xf32>
    %cst_38 = arith.constant dense<0.000000e+00> : vector<16xf32>
    %95 = vector.multi_reduction <add>, %94, %cst_38 [1] : vector<16x32xf32> to vector<16xf32>
    %96 = vector.shape_cast %95 : vector<16xf32> to vector<16x1xf32>
    %cst_39 = arith.constant 3.200000e+01 : f32
    %97 = vector.broadcast %cst_39 : f32 to vector<16x1xf32>
    %98 = arith.divf %96, %97 : vector<16x1xf32>
    %99 = vector.broadcast %91 : vector<16x1xf32> to vector<16x32xf32>
    %100 = arith.subf %87, %99 : vector<16x32xf32>
    %cst_40 = arith.constant 9.99999996E-13 : f32
    %101 = vector.broadcast %cst_40 : f32 to vector<16x1xf32>
    %102 = arith.addf %98, %101 : vector<16x1xf32>
    %103 = math.rsqrt %102 : vector<16x1xf32>
    %104 = vector.broadcast %103 : vector<16x1xf32> to vector<16x32xf32>
    %105 = arith.mulf %100, %104 : vector<16x32xf32>
    %106 = vector.broadcast %29 : vector<1x32xf32> to vector<16x32xf32>
    %107 = arith.mulf %105, %106 : vector<16x32xf32>
    %108 = vector.broadcast %30 : vector<1x32xf32> to vector<16x32xf32>
    %109 = arith.addf %107, %108 : vector<16x32xf32>
    %110 = arith.truncf %109 : vector<16x32xf32> to vector<16x32xbf16>
    %c0_41 = arith.constant 0 : index
    %c0_42 = arith.constant 0 : index
    %c0_43 = arith.constant 0 : index
    %111 = vector.load %arg7[%c0_41, %c0_42, %c0_43] : memref<2x32x64xbf16, #tpu.memory_space<vmem>>, vector<1x32x64xbf16>
    %112 = vector.shape_cast %111 : vector<1x32x64xbf16> to vector<32x64xbf16>
    %cst_44 = arith.constant dense<0.000000e+00> : vector<16x64xf32>
    %113 = tpu.matmul %110, %112, %cst_44 {dimension_numbers = #tpu.dot_dimension_numbers<[1], [0], [0], [1], [0, 0, 1, 1], [], []>} : vector<16x32xbf16>, vector<32x64xbf16>, vector<16x64xf32> -> vector<16x64xf32>
    %c0_45 = arith.constant 0 : index
    %c0_46 = arith.constant 0 : index
    %c0_47 = arith.constant 0 : index
    %114 = vector.load %arg8[%c0_45, %c0_46, %c0_47] : memref<2x1x64xf32, #tpu.memory_space<vmem>>, vector<1x1x64xf32>
    %115 = vector.shape_cast %114 : vector<1x1x64xf32> to vector<1x64xf32>
    %116 = vector.broadcast %115 : vector<1x64xf32> to vector<16x64xf32>
    %117 = arith.addf %113, %116 : vector<16x64xf32>
    %118 = arith.mulf %117, %117 : vector<16x64xf32>
    %119 = arith.mulf %117, %118 : vector<16x64xf32>
    %cst_48 = arith.constant 4.471500e-02 : f32
    %120 = vector.broadcast %cst_48 : f32 to vector<16x64xf32>
    %121 = arith.mulf %120, %119 : vector<16x64xf32>
    %122 = arith.addf %117, %121 : vector<16x64xf32>
    %cst_49 = arith.constant 0.797884583 : f32
    %123 = vector.broadcast %cst_49 : f32 to vector<16x64xf32>
    %124 = arith.mulf %123, %122 : vector<16x64xf32>
    %125 = math.tanh %124 : vector<16x64xf32>
    %cst_50 = arith.constant 1.000000e+00 : f32
    %126 = vector.broadcast %cst_50 : f32 to vector<16x64xf32>
    %127 = arith.addf %126, %125 : vector<16x64xf32>
    %cst_51 = arith.constant 5.000000e-01 : f32
    %128 = vector.broadcast %cst_51 : f32 to vector<16x64xf32>
    %129 = arith.mulf %128, %127 : vector<16x64xf32>
    %130 = arith.mulf %117, %129 : vector<16x64xf32>
    %131 = arith.truncf %130 : vector<16x64xf32> to vector<16x64xbf16>
    %c0_52 = arith.constant 0 : index
    %c0_53 = arith.constant 0 : index
    %c0_54 = arith.constant 0 : index
    %132 = vector.load %arg9[%c0_52, %c0_53, %c0_54] : memref<2x64x32xbf16, #tpu.memory_space<vmem>>, vector<1x64x32xbf16>
    %133 = vector.shape_cast %132 : vector<1x64x32xbf16> to vector<64x32xbf16>
    %cst_55 = arith.constant dense<0.000000e+00> : vector<16x32xf32>
    %134 = tpu.matmul %131, %133, %cst_55 {dimension_numbers = #tpu.dot_dimension_numbers<[1], [0], [0], [1], [0, 0, 1, 1], [], []>} : vector<16x64xbf16>, vector<64x32xbf16>, vector<16x32xf32> -> vector<16x32xf32>
    %135 = vector.broadcast %31 : vector<1x32xf32> to vector<16x32xf32>
    %136 = arith.addf %134, %135 : vector<16x32xf32>
    %137 = arith.addf %136, %109 : vector<16x32xf32>
    %cst_56 = arith.constant dense<0.000000e+00> : vector<16xf32>
    %138 = vector.multi_reduction <add>, %137, %cst_56 [1] : vector<16x32xf32> to vector<16xf32>
    %139 = vector.shape_cast %138 : vector<16xf32> to vector<16x1xf32>
    %cst_57 = arith.constant 3.200000e+01 : f32
    %140 = vector.broadcast %cst_57 : f32 to vector<16x1xf32>
    %141 = arith.divf %139, %140 : vector<16x1xf32>
    %142 = vector.broadcast %141 : vector<16x1xf32> to vector<16x32xf32>
    %143 = arith.subf %137, %142 : vector<16x32xf32>
    %144 = arith.mulf %143, %143 : vector<16x32xf32>
    %cst_58 = arith.constant dense<0.000000e+00> : vector<16xf32>
    %145 = vector.multi_reduction <add>, %144, %cst_58 [1] : vector<16x32xf32> to vector<16xf32>
    %146 = vector.shape_cast %145 : vector<16xf32> to vector<16x1xf32>
    %cst_59 = arith.constant 3.200000e+01 : f32
    %147 = vector.broadcast %cst_59 : f32 to vector<16x1xf32>
    %148 = arith.divf %146, %147 : vector<16x1xf32>
    %149 = vector.broadcast %141 : vector<16x1xf32> to vector<16x32xf32>
    %150 = arith.subf %137, %149 : vector<16x32xf32>
    %cst_60 = arith.constant 9.99999996E-13 : f32
    %151 = vector.broadcast %cst_60 : f32 to vector<16x1xf32>
    %152 = arith.addf %148, %151 : vector<16x1xf32>
    %153 = math.rsqrt %152 : vector<16x1xf32>
    %154 = vector.broadcast %153 : vector<16x1xf32> to vector<16x32xf32>
    %155 = arith.mulf %150, %154 : vector<16x32xf32>
    %156 = vector.broadcast %32 : vector<1x32xf32> to vector<16x32xf32>
    %157 = arith.mulf %155, %156 : vector<16x32xf32>
    %158 = vector.broadcast %33 : vector<1x32xf32> to vector<16x32xf32>
    %159 = arith.addf %157, %158 : vector<16x32xf32>
    %c1_61 = arith.constant 1 : index
    %c0_62 = arith.constant 0 : index
    %c0_63 = arith.constant 0 : index
    %160 = vector.load %arg10[%c1_61, %c0_62, %c0_63] : memref<2x6x32xf32, #tpu.memory_space<vmem>>, vector<1x6x32xf32>
    %161 = vector.shape_cast %160 : vector<1x6x32xf32> to vector<6x32xf32>
    %162 = vector.extract_strided_slice %161 {offsets = [0, 0], sizes = [1, 32], strides = [1, 1]} : vector<6x32xf32> to vector<1x32xf32>
    %163 = vector.extract_strided_slice %161 {offsets = [1, 0], sizes = [1, 32], strides = [1, 1]} : vector<6x32xf32> to vector<1x32xf32>
    %164 = vector.extract_strided_slice %161 {offsets = [2, 0], sizes = [1, 32], strides = [1, 1]} : vector<6x32xf32> to vector<1x32xf32>
    %165 = vector.extract_strided_slice %161 {offsets = [3, 0], sizes = [1, 32], strides = [1, 1]} : vector<6x32xf32> to vector<1x32xf32>
    %166 = vector.extract_strided_slice %161 {offsets = [4, 0], sizes = [1, 32], strides = [1, 1]} : vector<6x32xf32> to vector<1x32xf32>
    %167 = vector.extract_strided_slice %161 {offsets = [5, 0], sizes = [1, 32], strides = [1, 1]} : vector<6x32xf32> to vector<1x32xf32>
    %168 = arith.truncf %159 : vector<16x32xf32> to vector<16x32xbf16>
    %c1_64 = arith.constant 1 : index
    %c0_65 = arith.constant 0 : index
    %c0_66 = arith.constant 0 : index
    %169 = vector.load %arg4[%c1_64, %c0_65, %c0_66] : memref<2x32x96xbf16, #tpu.memory_space<vmem>>, vector<1x32x96xbf16>
    %170 = vector.shape_cast %169 : vector<1x32x96xbf16> to vector<32x96xbf16>
    %cst_67 = arith.constant dense<0.000000e+00> : vector<16x96xf32>
    %171 = tpu.matmul %168, %170, %cst_67 {dimension_numbers = #tpu.dot_dimension_numbers<[1], [0], [0], [1], [0, 0, 1, 1], [], []>} : vector<16x32xbf16>, vector<32x96xbf16>, vector<16x96xf32> -> vector<16x96xf32>
    %c1_68 = arith.constant 1 : index
    %c0_69 = arith.constant 0 : index
    %c0_70 = arith.constant 0 : index
    %172 = vector.load %arg5[%c1_68, %c0_69, %c0_70] : memref<2x1x96xf32, #tpu.memory_space<vmem>>, vector<1x1x96xf32>
    %173 = vector.shape_cast %172 : vector<1x1x96xf32> to vector<1x96xf32>
    %174 = vector.broadcast %173 : vector<1x96xf32> to vector<16x96xf32>
    %175 = arith.addf %171, %174 : vector<16x96xf32>
    %cst_71 = arith.constant 0.000000e+00 : f32
    %176 = vector.broadcast %cst_71 : f32 to vector<16x32xf32>
    %177 = vector.extract_strided_slice %175 {offsets = [0, 0], sizes = [16, 16], strides = [1, 1]} : vector<16x96xf32> to vector<16x16xf32>
    %178 = vector.extract_strided_slice %175 {offsets = [0, 32], sizes = [16, 16], strides = [1, 1]} : vector<16x96xf32> to vector<16x16xf32>
    %179 = vector.extract_strided_slice %175 {offsets = [0, 64], sizes = [16, 16], strides = [1, 1]} : vector<16x96xf32> to vector<16x16xf32>
    %cst_72 = arith.constant dense<0.000000e+00> : vector<16x16xf32>
    %180 = tpu.matmul %177, %178, %cst_72 {dimension_numbers = #tpu.dot_dimension_numbers<[1], [1], [0], [0], [0, 0, 1, 0], [], []>} : vector<16x16xf32>, vector<16x16xf32>, vector<16x16xf32> -> vector<16x16xf32>
    %181 = arith.addf %180, %25 : vector<16x16xf32>
    %cst_73 = arith.constant dense<0xFF800000> : vector<16xf32>
    %182 = vector.multi_reduction <maximumf>, %181, %cst_73 [1] : vector<16x16xf32> to vector<16xf32>
    %183 = vector.shape_cast %182 : vector<16xf32> to vector<16x1xf32>
    %184 = vector.broadcast %183 : vector<16x1xf32> to vector<16x16xf32>
    %185 = arith.subf %181, %184 : vector<16x16xf32>
    %186 = math.exp %185 : vector<16x16xf32>
    %cst_74 = arith.constant dense<0.000000e+00> : vector<16xf32>
    %187 = vector.multi_reduction <add>, %186, %cst_74 [1] : vector<16x16xf32> to vector<16xf32>
    %188 = vector.shape_cast %187 : vector<16xf32> to vector<16x1xf32>
    %189 = tpu.reciprocal %188 {approx = true} : vector<16x1xf32> -> vector<16x1xf32>
    %190 = vector.broadcast %189 : vector<16x1xf32> to vector<16x16xf32>
    %191 = arith.mulf %186, %190 : vector<16x16xf32>
    %cst_75 = arith.constant dense<0.000000e+00> : vector<16x16xf32>
    %192 = tpu.matmul %191, %179, %cst_75 {dimension_numbers = #tpu.dot_dimension_numbers<[1], [0], [0], [1], [0, 0, 1, 1], [], []>} : vector<16x16xf32>, vector<16x16xf32>, vector<16x16xf32> -> vector<16x16xf32>
    %193 = arith.truncf %192 : vector<16x16xf32> to vector<16x16xbf16>
    %c1_76 = arith.constant 1 : index
    %c0_77 = arith.constant 0 : index
    %c0_78 = arith.constant 0 : index
    %194 = vector.load %arg6[%c1_76, %c0_77, %c0_78] : memref<2x32x32xbf16, #tpu.memory_space<vmem>>, vector<1x16x32xbf16>
    %195 = vector.shape_cast %194 : vector<1x16x32xbf16> to vector<16x32xbf16>
    %cst_79 = arith.constant dense<0.000000e+00> : vector<16x32xf32>
    %196 = tpu.matmul %193, %195, %cst_79 {dimension_numbers = #tpu.dot_dimension_numbers<[1], [0], [0], [1], [0, 0, 1, 1], [], []>} : vector<16x16xbf16>, vector<16x32xbf16>, vector<16x32xf32> -> vector<16x32xf32>
    %197 = arith.addf %176, %196 : vector<16x32xf32>
    %198 = vector.extract_strided_slice %175 {offsets = [0, 16], sizes = [16, 16], strides = [1, 1]} : vector<16x96xf32> to vector<16x16xf32>
    %199 = vector.extract_strided_slice %175 {offsets = [0, 48], sizes = [16, 16], strides = [1, 1]} : vector<16x96xf32> to vector<16x16xf32>
    %200 = vector.extract_strided_slice %175 {offsets = [0, 80], sizes = [16, 16], strides = [1, 1]} : vector<16x96xf32> to vector<16x16xf32>
    %cst_80 = arith.constant dense<0.000000e+00> : vector<16x16xf32>
    %201 = tpu.matmul %198, %199, %cst_80 {dimension_numbers = #tpu.dot_dimension_numbers<[1], [1], [0], [0], [0, 0, 1, 0], [], []>} : vector<16x16xf32>, vector<16x16xf32>, vector<16x16xf32> -> vector<16x16xf32>
    %202 = arith.addf %201, %25 : vector<16x16xf32>
    %cst_81 = arith.constant dense<0xFF800000> : vector<16xf32>
    %203 = vector.multi_reduction <maximumf>, %202, %cst_81 [1] : vector<16x16xf32> to vector<16xf32>
    %204 = vector.shape_cast %203 : vector<16xf32> to vector<16x1xf32>
    %205 = vector.broadcast %204 : vector<16x1xf32> to vector<16x16xf32>
    %206 = arith.subf %202, %205 : vector<16x16xf32>
    %207 = math.exp %206 : vector<16x16xf32>
    %cst_82 = arith.constant dense<0.000000e+00> : vector<16xf32>
    %208 = vector.multi_reduction <add>, %207, %cst_82 [1] : vector<16x16xf32> to vector<16xf32>
    %209 = vector.shape_cast %208 : vector<16xf32> to vector<16x1xf32>
    %210 = tpu.reciprocal %209 {approx = true} : vector<16x1xf32> -> vector<16x1xf32>
    %211 = vector.broadcast %210 : vector<16x1xf32> to vector<16x16xf32>
    %212 = arith.mulf %207, %211 : vector<16x16xf32>
    %cst_83 = arith.constant dense<0.000000e+00> : vector<16x16xf32>
    %213 = tpu.matmul %212, %200, %cst_83 {dimension_numbers = #tpu.dot_dimension_numbers<[1], [0], [0], [1], [0, 0, 1, 1], [], []>} : vector<16x16xf32>, vector<16x16xf32>, vector<16x16xf32> -> vector<16x16xf32>
    %214 = arith.truncf %213 : vector<16x16xf32> to vector<16x16xbf16>
    %c1_84 = arith.constant 1 : index
    %c16_85 = arith.constant 16 : index
    %c0_86 = arith.constant 0 : index
    %215 = vector.load %arg6[%c1_84, %c16_85, %c0_86] : memref<2x32x32xbf16, #tpu.memory_space<vmem>>, vector<1x16x32xbf16>
    %216 = vector.shape_cast %215 : vector<1x16x32xbf16> to vector<16x32xbf16>
    %cst_87 = arith.constant dense<0.000000e+00> : vector<16x32xf32>
    %217 = tpu.matmul %214, %216, %cst_87 {dimension_numbers = #tpu.dot_dimension_numbers<[1], [0], [0], [1], [0, 0, 1, 1], [], []>} : vector<16x16xbf16>, vector<16x32xbf16>, vector<16x32xf32> -> vector<16x32xf32>
    %218 = arith.addf %197, %217 : vector<16x32xf32>
    %219 = vector.broadcast %162 : vector<1x32xf32> to vector<16x32xf32>
    %220 = arith.addf %218, %219 : vector<16x32xf32>
    %221 = arith.addf %220, %159 : vector<16x32xf32>
    %cst_88 = arith.constant dense<0.000000e+00> : vector<16xf32>
    %222 = vector.multi_reduction <add>, %221, %cst_88 [1] : vector<16x32xf32> to vector<16xf32>
    %223 = vector.shape_cast %222 : vector<16xf32> to vector<16x1xf32>
    %cst_89 = arith.constant 3.200000e+01 : f32
    %224 = vector.broadcast %cst_89 : f32 to vector<16x1xf32>
    %225 = arith.divf %223, %224 : vector<16x1xf32>
    %226 = vector.broadcast %225 : vector<16x1xf32> to vector<16x32xf32>
    %227 = arith.subf %221, %226 : vector<16x32xf32>
    %228 = arith.mulf %227, %227 : vector<16x32xf32>
    %cst_90 = arith.constant dense<0.000000e+00> : vector<16xf32>
    %229 = vector.multi_reduction <add>, %228, %cst_90 [1] : vector<16x32xf32> to vector<16xf32>
    %230 = vector.shape_cast %229 : vector<16xf32> to vector<16x1xf32>
    %cst_91 = arith.constant 3.200000e+01 : f32
    %231 = vector.broadcast %cst_91 : f32 to vector<16x1xf32>
    %232 = arith.divf %230, %231 : vector<16x1xf32>
    %233 = vector.broadcast %225 : vector<16x1xf32> to vector<16x32xf32>
    %234 = arith.subf %221, %233 : vector<16x32xf32>
    %cst_92 = arith.constant 9.99999996E-13 : f32
    %235 = vector.broadcast %cst_92 : f32 to vector<16x1xf32>
    %236 = arith.addf %232, %235 : vector<16x1xf32>
    %237 = math.rsqrt %236 : vector<16x1xf32>
    %238 = vector.broadcast %237 : vector<16x1xf32> to vector<16x32xf32>
    %239 = arith.mulf %234, %238 : vector<16x32xf32>
    %240 = vector.broadcast %163 : vector<1x32xf32> to vector<16x32xf32>
    %241 = arith.mulf %239, %240 : vector<16x32xf32>
    %242 = vector.broadcast %164 : vector<1x32xf32> to vector<16x32xf32>
    %243 = arith.addf %241, %242 : vector<16x32xf32>
    %244 = arith.truncf %243 : vector<16x32xf32> to vector<16x32xbf16>
    %c1_93 = arith.constant 1 : index
    %c0_94 = arith.constant 0 : index
    %c0_95 = arith.constant 0 : index
    %245 = vector.load %arg7[%c1_93, %c0_94, %c0_95] : memref<2x32x64xbf16, #tpu.memory_space<vmem>>, vector<1x32x64xbf16>
    %246 = vector.shape_cast %245 : vector<1x32x64xbf16> to vector<32x64xbf16>
    %cst_96 = arith.constant dense<0.000000e+00> : vector<16x64xf32>
    %247 = tpu.matmul %244, %246, %cst_96 {dimension_numbers = #tpu.dot_dimension_numbers<[1], [0], [0], [1], [0, 0, 1, 1], [], []>} : vector<16x32xbf16>, vector<32x64xbf16>, vector<16x64xf32> -> vector<16x64xf32>
    %c1_97 = arith.constant 1 : index
    %c0_98 = arith.constant 0 : index
    %c0_99 = arith.constant 0 : index
    %248 = vector.load %arg8[%c1_97, %c0_98, %c0_99] : memref<2x1x64xf32, #tpu.memory_space<vmem>>, vector<1x1x64xf32>
    %249 = vector.shape_cast %248 : vector<1x1x64xf32> to vector<1x64xf32>
    %250 = vector.broadcast %249 : vector<1x64xf32> to vector<16x64xf32>
    %251 = arith.addf %247, %250 : vector<16x64xf32>
    %252 = arith.mulf %251, %251 : vector<16x64xf32>
    %253 = arith.mulf %251, %252 : vector<16x64xf32>
    %cst_100 = arith.constant 4.471500e-02 : f32
    %254 = vector.broadcast %cst_100 : f32 to vector<16x64xf32>
    %255 = arith.mulf %254, %253 : vector<16x64xf32>
    %256 = arith.addf %251, %255 : vector<16x64xf32>
    %cst_101 = arith.constant 0.797884583 : f32
    %257 = vector.broadcast %cst_101 : f32 to vector<16x64xf32>
    %258 = arith.mulf %257, %256 : vector<16x64xf32>
    %259 = math.tanh %258 : vector<16x64xf32>
    %cst_102 = arith.constant 1.000000e+00 : f32
    %260 = vector.broadcast %cst_102 : f32 to vector<16x64xf32>
    %261 = arith.addf %260, %259 : vector<16x64xf32>
    %cst_103 = arith.constant 5.000000e-01 : f32
    %262 = vector.broadcast %cst_103 : f32 to vector<16x64xf32>
    %263 = arith.mulf %262, %261 : vector<16x64xf32>
    %264 = arith.mulf %251, %263 : vector<16x64xf32>
    %265 = arith.truncf %264 : vector<16x64xf32> to vector<16x64xbf16>
    %c1_104 = arith.constant 1 : index
    %c0_105 = arith.constant 0 : index
    %c0_106 = arith.constant 0 : index
    %266 = vector.load %arg9[%c1_104, %c0_105, %c0_106] : memref<2x64x32xbf16, #tpu.memory_space<vmem>>, vector<1x64x32xbf16>
    %267 = vector.shape_cast %266 : vector<1x64x32xbf16> to vector<64x32xbf16>
    %cst_107 = arith.constant dense<0.000000e+00> : vector<16x32xf32>
    %268 = tpu.matmul %265, %267, %cst_107 {dimension_numbers = #tpu.dot_dimension_numbers<[1], [0], [0], [1], [0, 0, 1, 1], [], []>} : vector<16x64xbf16>, vector<64x32xbf16>, vector<16x32xf32> -> vector<16x32xf32>
    %269 = vector.broadcast %165 : vector<1x32xf32> to vector<16x32xf32>
    %270 = arith.addf %268, %269 : vector<16x32xf32>
    %271 = arith.addf %270, %243 : vector<16x32xf32>
    %cst_108 = arith.constant dense<0.000000e+00> : vector<16xf32>
    %272 = vector.multi_reduction <add>, %271, %cst_108 [1] : vector<16x32xf32> to vector<16xf32>
    %273 = vector.shape_cast %272 : vector<16xf32> to vector<16x1xf32>
    %cst_109 = arith.constant 3.200000e+01 : f32
    %274 = vector.broadcast %cst_109 : f32 to vector<16x1xf32>
    %275 = arith.divf %273, %274 : vector<16x1xf32>
    %276 = vector.broadcast %275 : vector<16x1xf32> to vector<16x32xf32>
    %277 = arith.subf %271, %276 : vector<16x32xf32>
    %278 = arith.mulf %277, %277 : vector<16x32xf32>
    %cst_110 = arith.constant dense<0.000000e+00> : vector<16xf32>
    %279 = vector.multi_reduction <add>, %278, %cst_110 [1] : vector<16x32xf32> to vector<16xf32>
    %280 = vector.shape_cast %279 : vector<16xf32> to vector<16x1xf32>
    %cst_111 = arith.constant 3.200000e+01 : f32
    %281 = vector.broadcast %cst_111 : f32 to vector<16x1xf32>
    %282 = arith.divf %280, %281 : vector<16x1xf32>
    %283 = vector.broadcast %275 : vector<16x1xf32> to vector<16x32xf32>
    %284 = arith.subf %271, %283 : vector<16x32xf32>
    %cst_112 = arith.constant 9.99999996E-13 : f32
    %285 = vector.broadcast %cst_112 : f32 to vector<16x1xf32>
    %286 = arith.addf %282, %285 : vector<16x1xf32>
    %287 = math.rsqrt %286 : vector<16x1xf32>
    %288 = vector.broadcast %287 : vector<16x1xf32> to vector<16x32xf32>
    %289 = arith.mulf %284, %288 : vector<16x32xf32>
    %290 = vector.broadcast %166 : vector<1x32xf32> to vector<16x32xf32>
    %291 = arith.mulf %289, %290 : vector<16x32xf32>
    %292 = vector.broadcast %167 : vector<1x32xf32> to vector<16x32xf32>
    %293 = arith.addf %291, %292 : vector<16x32xf32>
    %c0_113 = arith.constant 0 : index
    %c0_114 = arith.constant 0 : index
    %294 = vector.load %arg12[%c0_113, %c0_114] : memref<16x32xf32, #tpu.memory_space<vmem>>, vector<16x32xf32>
    tpu.vector_store %arg12[%c0_113, %c0_114], %293 {strides = array<i32>} : memref<16x32xf32, #tpu.memory_space<vmem>>, vector<16x32xf32>,
    %295 = vector.extract_strided_slice %293 {offsets = [0, 0], sizes = [1, 32], strides = [1, 1]} : vector<16x32xf32> to vector<1x32xf32>
    %296 = vector.extract_strided_slice %293 {offsets = [8, 0], sizes = [1, 32], strides = [1, 1]} : vector<16x32xf32> to vector<1x32xf32>
    %297 = tpu.concatenate %295, %296 in 0 : vector<1x32xf32>, vector<1x32xf32> -> vector<2x32xf32>
    %298 = arith.truncf %297 : vector<2x32xf32> to vector<2x32xbf16>
    %c0_115 = arith.constant 0 : index
    %c0_116 = arith.constant 0 : index
    %299 = vector.load %arg11[%c0_115, %c0_116] : memref<32x32xbf16, #tpu.memory_space<vmem>>, vector<32x32xbf16>
    %cst_117 = arith.constant dense<0.000000e+00> : vector<2x32xf32>
    %300 = tpu.matmul %298, %299, %cst_117 {dimension_numbers = #tpu.dot_dimension_numbers<[1], [0], [0], [1], [0, 0, 1, 1], [], []>} : vector<2x32xbf16>, vector<32x32xbf16>, vector<2x32xf32> -> vector<2x32xf32>
    %c2 = arith.constant 2 : index
    %c0_118 = arith.constant 0 : index
    %301 = vector.load %arg3[%c2, %c0_118] : memref<3x32xf32, #tpu.memory_space<vmem>>, vector<1x32xf32>
    %302 = vector.broadcast %301 : vector<1x32xf32> to vector<2x32xf32>
    %303 = arith.addf %300, %302 : vector<2x32xf32>
    %304 = math.tanh %303 : vector<2x32xf32>
    %c0_119 = arith.constant 0 : index
    %c0_120 = arith.constant 0 : index
    %305 = vector.load %arg13[%c0_119, %c0_120] : memref<2x32xf32, #tpu.memory_space<vmem>>, vector<2x32xf32>
    tpu.vector_store %arg13[%c0_119, %c0_120], %304 {strides = array<i32>} : memref<2x32xf32, #tpu.memory_space<vmem>>, vector<2x32xf32>,
    return
  }
  func.func @transform_0(%arg0: i32) -> (i32, i32) {
    %c0_i32 = arith.constant 0 : i32
    %c0_i32_0 = arith.constant 0 : i32
    %c0_i32_1 = arith.constant 0 : i32
    return %c0_i32, %c0_i32_0 : i32, i32
  }
  func.func @transform_1(%arg0: i32) -> (i32, i32) {
    %c0_i32 = arith.constant 0 : i32
    %c0_i32_0 = arith.constant 0 : i32
    %c0_i32_1 = arith.constant 0 : i32
    return %c0_i32, %c0_i32_0 : i32, i32
  }
  func.func @transform_2(%arg0: i32) -> (i32, i32) {
    %c0_i32 = arith.constant 0 : i32
    %c0_i32_0 = arith.constant 0 : i32
    %c0_i32_1 = arith.constant 0 : i32
    return %c0_i32, %c0_i32_0 : i32, i32
  }
  func.func @transform_3(%arg0: i32) -> (i32, i32, i32) {
    %c0_i32 = arith.constant 0 : i32
    %c0_i32_0 = arith.constant 0 : i32
    %c0_i32_1 = arith.constant 0 : i32
    %c0_i32_2 = arith.constant 0 : i32
    return %c0_i32, %c0_i32_0, %c0_i32_1 : i32, i32, i32
  }
  func.func @transform_4(%arg0: i32) -> (i32, i32, i32) {
    %c0_i32 = arith.constant 0 : i32
    %c0_i32_0 = arith.constant 0 : i32
    %c0_i32_1 = arith.constant 0 : i32
    %c0_i32_2 = arith.constant 0 : i32
    return %c0_i32, %c0_i32_0, %c0_i32_1 : i32, i32, i32
  }
  func.func @transform_5(%arg0: i32) -> (i32, i32, i32) {
    %c0_i32 = arith.constant 0 : i32
    %c0_i32_0 = arith.constant 0 : i32
    %c0_i32_1 = arith.constant 0 : i32
    %c0_i32_2 = arith.constant 0 : i32
    return %c0_i32, %c0_i32_0, %c0_i32_1 : i32, i32, i32
  }
  func.func @transform_6(%arg0: i32) -> (i32, i32, i32) {
    %c0_i32 = arith.constant 0 : i32
    %c0_i32_0 = arith.constant 0 : i32
    %c0_i32_1 = arith.constant 0 : i32
    %c0_i32_2 = arith.constant 0 : i32
    return %c0_i32, %c0_i32_0, %c0_i32_1 : i32, i32, i32
  }
  func.func @transform_7(%arg0: i32) -> (i32, i32, i32) {
    %c0_i32 = arith.constant 0 : i32
    %c0_i32_0 = arith.constant 0 : i32
    %c0_i32_1 = arith.constant 0 : i32
    %c0_i32_2 = arith.constant 0 : i32
    return %c0_i32, %c0_i32_0, %c0_i32_1 : i32, i32, i32
  }
  func.func @transform_8(%arg0: i32) -> (i32, i32, i32) {
    %c0_i32 = arith.constant 0 : i32
    %c0_i32_0 = arith.constant 0 : i32
    %c0_i32_1 = arith.constant 0 : i32
    %c0_i32_2 = arith.constant 0 : i32
    return %c0_i32, %c0_i32_0, %c0_i32_1 : i32, i32, i32
  }
  func.func @transform_9(%arg0: i32) -> (i32, i32, i32) {
    %c0_i32 = arith.constant 0 : i32
    %c0_i32_0 = arith.constant 0 : i32
    %c0_i32_1 = arith.constant 0 : i32
    %c0_i32_2 = arith.constant 0 : i32
    return %c0_i32, %c0_i32_0, %c0_i32_1 : i32, i32, i32
  }
  func.func @transform_10(%arg0: i32) -> (i32, i32) {
    %c0_i32 = arith.constant 0 : i32
    %c0_i32_0 = arith.constant 0 : i32
    %c0_i32_1 = arith.constant 0 : i32
    return %c0_i32, %c0_i32_0 : i32, i32
  }
  func.func @transform_11(%arg0: i32) -> (i32, i32) {
    %c0_i32 = arith.constant 0 : i32
    %c0_i32_0 = arith.constant 0 : i32
    %c0_i32_1 = arith.constant 0 : i32
    return %c0_i32, %c0_i32_0 : i32, i32
  }
  func.func @transform_12(%arg0: i32) -> (i32, i32) {
    %c0_i32 = arith.constant 0 : i32
    %c0_i32_0 = arith.constant 0 : i32
    %c0_i32_1 = arith.constant 0 : i32
    return %c0_i32, %c0_i32_0 : i32, i32
  }
}

</mosaic_0001>

<llo_original>
// kernel: seq_encoder_forward.1
$region0: #{seq_encoder_forward.1}
  #allocation0 [shape = 'u32[]', space=smem, size = 0x4, offset = 0x4, fixed_abs, tag = 'smem constant byte address 0x4 - core index']
  #allocation1 [shape = 'u32[144,128]{1,0:T(1,128)}', space=vmem, size = 0x12000, scoped, tag = 'internal scratch']
  %s0 = inlined_call_operand.vmem [shape: f32[16,32], index: 0, kind: input, shape index: {}]
  %s1 = inlined_call_operand.vmem [shape: f32[16,16], index: 1, kind: input, shape index: {}]
  %s2 = inlined_call_operand.vmem [shape: f32[3,32], index: 2, kind: input, shape index: {}]
  %s3 = inlined_call_operand.vmem [shape: bf16[2,32,96], index: 3, kind: input, shape index: {}]
  %s4 = inlined_call_operand.vmem [shape: f32[2,1,96], index: 4, kind: input, shape index: {}]
  %s5 = inlined_call_operand.vmem [shape: bf16[2,32,32], index: 5, kind: input, shape index: {}]
  %s6 = inlined_call_operand.vmem [shape: bf16[2,32,64], index: 6, kind: input, shape index: {}]
  %s7 = inlined_call_operand.vmem [shape: f32[2,1,64], index: 7, kind: input, shape index: {}]
  %s8 = inlined_call_operand.vmem [shape: bf16[2,64,32], index: 8, kind: input, shape index: {}]
  %s9 = inlined_call_operand.vmem [shape: f32[2,6,32], index: 9, kind: input, shape index: {}]
  %s10 = inlined_call_operand.vmem [shape: bf16[32,32], index: 10, kind: input, shape index: {}]
  %s11 = inlined_call_operand.hbm [shape: f32[16,32], index: 11, kind: output, shape index: {0}]
  %s12 = inlined_call_operand.hbm [shape: f32[2,32], index: 12, kind: output, shape index: {1}]
  %13 = xla_tuple %s11, %s12
  %s14 = sld [smem:[#allocation0]]
  $region62: #{seq_encoder_forward.1} parent=0
    _
  %s16 = ssub.s32 1, %s14
  %s17 = scalar_select 0, %s16, %s14
  $region1: #{seq_encoder_forward.1} parent=0
    #allocation2 [shape = 'u8[8192]{0}', space=vmem, size = 0x2000, scoped, tag = 'output window, operand 0, single buffered']
    #allocation3 [shape = 's32[1]{0}', space=sflag, size = 0x4, scoped, tag = 'scoped memory for seq_encoder_forward.1']
    #allocation4 [shape = 'u8[1024]{0}', space=vmem, size = 0x400, scoped, tag = 'output window, operand 1, single buffered']
    #allocation5 [shape = 's32[1]{0}', space=sflag, size = 0x4, scoped, tag = 'scoped memory for seq_encoder_forward.1']
    %18 = vsyncpa [#allocation3], 0
    %19 = vsyncpa [#allocation5], 0
    // Predicated region
    $region2: #{seq_encoder_forward.1} parent=1 // pred_check
      _
    $region3: #{seq_encoder_forward.1} parent=1 // pred_check_branch
      %21 = sbr.rel (0) target = $region5
    $region4: #{seq_encoder_forward.1} parent=1 // pred_region
      _
    $region5: #{seq_encoder_forward.1} parent=1 // pred_fallthru
      _
    // Predicated region
    $region6: #{seq_encoder_forward.1} parent=1 // pred_check
      _
    $region7: #{seq_encoder_forward.1} parent=1 // pred_check_branch
      %23 = sbr.rel (0) target = $region9
    $region8: #{seq_encoder_forward.1} parent=1 // pred_region
      _
    $region9: #{seq_encoder_forward.1} parent=1 // pred_fallthru
      _
    // Predicated region
    $region10: #{seq_encoder_forward.1} parent=1 // pred_check
      _
    $region11: #{seq_encoder_forward.1} parent=1 // pred_check_branch
      %25 = sbr.rel (0) target = $region13
    $region12: #{seq_encoder_forward.1} parent=1 // pred_region
      _
    $region13: #{seq_encoder_forward.1} parent=1 // pred_fallthru
      _
    // Predicated region
    $region14: #{seq_encoder_forward.1} parent=1 // pred_check
      _
    $region15: #{seq_encoder_forward.1} parent=1 // pred_check_branch
      %27 = sbr.rel (0) target = $region17
    $region16: #{seq_encoder_forward.1} parent=1 // pred_region
      _
    $region17: #{seq_encoder_forward.1} parent=1 // pred_fallthru
      _
    // Predicated region
    $region18: #{seq_encoder_forward.1} parent=1 // pred_check
      _
    $region19: #{seq_encoder_forward.1} parent=1 // pred_check_branch
      %29 = sbr.rel (0) target = $region21
    $region20: #{seq_encoder_forward.1} parent=1 // pred_region
      _
    $region21: #{seq_encoder_forward.1} parent=1 // pred_fallthru
      _
    // Predicated region
    $region22: #{seq_encoder_forward.1} parent=1 // pred_check
      _
    $region23: #{seq_encoder_forward.1} parent=1 // pred_check_branch
      %31 = sbr.rel (0) target = $region25
    $region24: #{seq_encoder_forward.1} parent=1 // pred_region
      _
    $region25: #{seq_encoder_forward.1} parent=1 // pred_fallthru
      _
    // Predicated region
    $region26: #{seq_encoder_forward.1} parent=1 // pred_check
      _
    $region27: #{seq_encoder_forward.1} parent=1 // pred_check_branch
      %33 = sbr.rel (0) target = $region29
    $region28: #{seq_encoder_forward.1} parent=1 // pred_region
      _
    $region29: #{seq_encoder_forward.1} parent=1 // pred_fallthru
      _
    // Predicated region
    $region30: #{seq_encoder_forward.1} parent=1 // pred_check
      _
    $region31: #{seq_encoder_forward.1} parent=1 // pred_check_branch
      %35 = sbr.rel (0) target = $region33
    $region32: #{seq_encoder_forward.1} parent=1 // pred_region
      _
    $region33: #{seq_encoder_forward.1} parent=1 // pred_fallthru
      _
    // Predicated region
    $region34: #{seq_encoder_forward.1} parent=1 // pred_check
      _
    $region35: #{seq_encoder_forward.1} parent=1 // pred_check_branch
      %37 = sbr.rel (0) target = $region37
    $region36: #{seq_encoder_forward.1} parent=1 // pred_region
      _
    $region37: #{seq_encoder_forward.1} parent=1 // pred_fallthru
      _
    // Predicated region
    $region38: #{seq_encoder_forward.1} parent=1 // pred_check
      _
    $region39: #{seq_encoder_forward.1} parent=1 // pred_check_branch
      %39 = sbr.rel (0) target = $region41
    $region40: #{seq_encoder_forward.1} parent=1 // pred_region
      _
    $region41: #{seq_encoder_forward.1} parent=1 // pred_fallthru
      _
    // Predicated region
    $region42: #{seq_encoder_forward.1} parent=1 // pred_check
      _
    $region43: #{seq_encoder_forward.1} parent=1 // pred_check_branch
      %41 = sbr.rel (0) target = $region45
    $region44: #{seq_encoder_forward.1} parent=1 // pred_region
      _
    $region45: #{seq_encoder_forward.1} parent=1 // pred_fallthru
      _
    %v43 = vld [vmem:[%s0] sm:$0xff]
    %v44 = vld [vmem:[%s0 + $0x8] sm:$0xff]
    %v45 = vld [vmem:[%s2] sm:$0x1]
    %v46 = vld [vmem:[%s2 + $0x1] sm:$0x1]
    %vm47 = vcmask 261120
    %v48 = vsel %vm47, %v43, 0.0
    %49 = vadd.xlane.f32.xlu0 %v48
    %v50 = vpop.xlane.xlu0 %49
    %v51 = vsel %vm47, %v44, 0.0
    %52 = vadd.xlane.f32.xlu0 %v51
    %v53 = vpop.xlane.xlu0 %52
    %v54 = vrcp.pop 32.0
    %v55 = vmul.f32 %v50, %v54
    %v56 = vmul.f32 %v53, %v54
    %v57 = vsub.f32 %v43, %v55
    %v58 = vsub.f32 %v44, %v56
    %v59 = vmul.f32 %v57, %v57
    %v60 = vmul.f32 %v58, %v58
    %v61 = vsel %vm47, %v59, 0.0
    %62 = vadd.xlane.f32.xlu0 %v61
    %v63 = vpop.xlane.xlu0 %62
    %v64 = vsel %vm47, %v60, 0.0
    %65 = vadd.xlane.f32.xlu0 %v64
    %v66 = vpop.xlane.xlu0 %65
    %v67 = vmul.f32 %v63, %v54
    %v68 = vmul.f32 %v66, %v54
    %v69 = vadd.f32 %v67, 1e-12
    %v70 = vadd.f32 %v68, 1e-12
    %v71 = vrsqrt.pop %v69
    %v72 = vrsqrt.pop %v70
    %v73 = vmul.f32 %v57, %v71
    %v74 = vmul.f32 %v58, %v72
    %v75 = vlaneseq
    %v76 = vshrl.u32 %v75, 7
    %v77 = vsub.s32 0, %v76
    %v78 = vrot.slane %v45, %v77
    %v79 = vmul.f32 %v73, %v78
    %v80 = vmul.f32 %v74, %v78
    %v81 = vlaneseq
    %v82 = vshrl.u32 %v81, 7
    %v83 = vsub.s32 0, %v82
    %v84 = vrot.slane %v46, %v83
    %v85 = vadd.f32 %v79, %v84
    %v86 = vadd.f32 %v80, %v84
    %v87 = vld [vmem:[%s1] sm:$0xff]
    %v88 = vld [vmem:[%s1 + $0x8] sm:$0xff]
    %v89 = vld [vmem:[%s9] sm:$0x3f]
    %v90 = vpack.c.bf16 %v86, %v85
    %v91 = vld [vmem:[%s3] sm:$0xf]
    %v92 = vld [vmem:[%s3 + $0x4] sm:$0xf]
    %v93 = vld [vmem:[%s3 + $0x8] sm:$0xf]
    %v94 = vld [vmem:[%s3 + $0xc] sm:$0xf]
    %v95 = vld [vmem:[%s4] sm:$0x1]
    %v97 = vlaneseq
    %v98 = vshrl.u32 %v97, 7
    %v99 = vsub.s32 0, %v98
    %v100 = vrot.slane %v95, %v99
    %v106 = vunpack.c.l.b16 %v91
    %v107 = vunpack.c.l.b16 %v92
    %v108 = vunpack.c.l.b16 %v93
    %v109 = vunpack.c.l.b16 %v94
    %v110 = vpack.c.b16 %v107, %v106
    %v111 = vpack.c.b16 %v109, %v108
    %v115 = vsel %vm47, %v90, 0
    %117 = vmatprep.subr.bf16.mxu0 0
    %118 = vmatpush1.bf16.msra.mxu0 0
    %119 = vmatprep.subr.bf16.mxu0 0
    %120 = vmatpush1.bf16.msra.mxu0 0
    %121 = vmatprep.subr.bf16.mxu0 0
    %122 = vmatpush1.bf16.msra.mxu0 0
    %123 = vmatprep.subr.bf16.mxu0 0
    %124 = vmatpush1.bf16.msra.mxu0 0
    %125 = vmatprep.subr.bf16.mxu0 0
    %126 = vmatpush1.bf16.msra.mxu0 0
    %127 = vmatprep.subr.bf16.mxu0 0
    %128 = vmatpush1.bf16.msra.mxu0 0
    %129 = vmatprep.subr.bf16.mxu0 0
    %130 = vmatpush1.bf16.msra.mxu0 %v111
    %131 = vmatprep.subr.bf16.mxu0 0
    %132 = vmatpush1.bf16.msra.mxu0 %v110
    %133 = vmatprep.subr.bf16.mxu0 0
    %134 = vmatpush2.bf16.msra.mxu0 0
    %135 = vmatprep.subr.bf16.mxu0 0
    %136 = vmatpush2.bf16.msra.mxu0 0
    %137 = vmatprep.subr.bf16.mxu0 0
    %138 = vmatpush2.bf16.msra.mxu0 0
    %139 = vmatprep.subr.bf16.mxu0 0
    %140 = vmatpush2.bf16.msra.mxu0 0
    %141 = vmatprep.subr.bf16.mxu0 0
    %142 = vmatpush2.bf16.msra.mxu0 0
    %143 = vmatprep.subr.bf16.mxu0 0
    %144 = vmatpush2.bf16.msra.mxu0 0
    %145 = vmatprep.subr.bf16.mxu0 0
    %146 = vmatpush2.bf16.msra.mxu0 0
    %147 = vmatprep.subr.bf16.mxu0 0
    %148 = vmatpush2.bf16.msra.mxu0 0
    %149 = vmatprep.mubr.bf16.mxu0 0
    %150 = vmatmul.mubr.bf16.gmra.mxu0 %v115
    %v151 = vpop.f32.mrf.mxu0
    %v152 = vadd.f32 %v100, %v151
    %v153 = vpop.f32.mrf.mxu0
    %v154 = vpop.f32.mrf.mxu0
    %v155 = vadd.f32 %v100, %v154
    %v156 = vpop.f32.mrf.mxu0
    %157 = vdwg.mxu0
    %160 = vrot.lane.b32.xlu0 %v152, 96
    %v161 = vpop.permute.xlu0 %160
    %162 = vrot.lane.b32.xlu0 %v155, 96
    %v163 = vpop.permute.xlu0 %162
    %vm164 = vcmask 130048
    %v165 = vsel %vm164, %v152, 0
    %v167 = vsel %vm164, %v155, 0
    %v169 = vsel %vm164, %v161, 0
    %v171 = vsel %vm164, %v163, 0
    %173 = vmatprep.subr.mxu0 0.0
    %174 = vmatpush1.xpose.msra.mxu0 0.0
    %175 = vmatprep.subr.mxu0 0.0
    %176 = vmatpush1.xpose.msra.mxu0 0.0
    %177 = vmatprep.subr.mxu0 0.0
    %178 = vmatpush1.xpose.msra.mxu0 0.0
    %179 = vmatprep.subr.mxu0 0.0
    %180 = vmatpush1.xpose.msra.mxu0 0.0
    %181 = vmatprep.subr.mxu0 0.0
    %182 = vmatpush1.xpose.msra.mxu0 0.0
    %183 = vmatprep.subr.mxu0 0.0
    %184 = vmatpush1.xpose.msra.mxu0 0.0
    %185 = vmatprep.subr.mxu0 0.0
    %186 = vmatpush1.xpose.msra.mxu0 0.0
    %187 = vmatprep.subr.mxu0 0.0
    %188 = vmatpush1.xpose.msra.mxu0 0.0
    %189 = vmatprep.subr.mxu0 0.0
    %190 = vmatpush1.xpose.msra.mxu0 0.0
    %191 = vmatprep.subr.mxu0 0.0
    %192 = vmatpush1.xpose.msra.mxu0 0.0
    %193 = vmatprep.subr.mxu0 0.0
    %194 = vmatpush1.xpose.msra.mxu0 0.0
    %195 = vmatprep.subr.mxu0 0.0
    %196 = vmatpush1.xpose.msra.mxu0 0.0
    %197 = vmatprep.subr.mxu0 0.0
    %198 = vmatpush1.xpose.msra.mxu0 0.0
    %199 = vmatprep.subr.mxu0 0.0
    %200 = vmatpush1.xpose.msra.mxu0 0.0
    %201 = vmatprep.subr.mxu0 0.0
    %202 = vmatpush1.xpose.msra.mxu0 %v171
    %203 = vmatprep.subr.mxu0 0.0
    %204 = vmatpush1.xpose.msra.mxu0 %v169
    %205 = vmatprep.subr.mxu0 0.0
    %206 = vmatpush2.xpose.msra.mxu0 0.0
    %207 = vmatprep.subr.mxu0 0.0
    %208 = vmatpush2.xpose.msra.mxu0 0.0
    %209 = vmatprep.subr.mxu0 0.0
    %210 = vmatpush2.xpose.msra.mxu0 0.0
    %211 = vmatprep.subr.mxu0 0.0
    %212 = vmatpush2.xpose.msra.mxu0 0.0
    %213 = vmatprep.subr.mxu0 0.0
    %214 = vmatpush2.xpose.msra.mxu0 0.0
    %215 = vmatprep.subr.mxu0 0.0
    %216 = vmatpush2.xpose.msra.mxu0 0.0
    %217 = vmatprep.subr.mxu0 0.0
    %218 = vmatpush2.xpose.msra.mxu0 0.0
    %219 = vmatprep.subr.mxu0 0.0
    %220 = vmatpush2.xpose.msra.mxu0 0.0
    %221 = vmatprep.subr.mxu0 0.0
    %222 = vmatpush2.xpose.msra.mxu0 0.0
    %223 = vmatprep.subr.mxu0 0.0
    %224 = vmatpush2.xpose.msra.mxu0 0.0
    %225 = vmatprep.subr.mxu0 0.0
    %226 = vmatpush2.xpose.msra.mxu0 0.0
    %227 = vmatprep.subr.mxu0 0.0
    %228 = vmatpush2.xpose.msra.mxu0 0.0
    %229 = vmatprep.subr.mxu0 0.0
    %230 = vmatpush2.xpose.msra.mxu0 0.0
    %231 = vmatprep.subr.mxu0 0.0
    %232 = vmatpush2.xpose.msra.mxu0 0.0
    %233 = vmatprep.subr.mxu0 0.0
    %234 = vmatpush2.xpose.msra.mxu0 0.0
    %235 = vmatprep.subr.mxu0 0.0
    %236 = vmatpush2.xpose.msra.mxu0 0.0
    %237 = vmatprep.mubr.f32.mxu0 0.0
    %238 = vmatmul.mubr.f32.gmra.mxu0 %v165
    %v239 = vpop.f32.mrf.mxu0
    %v240 = vadd.f32 %v87, %v239
    %v241 = vpop.f32.mrf.mxu0
    %242 = vmatprep.mubr.f32.mxu0 0.0
    %243 = vmatmul.mubr.f32.gmra.mxu0 %v167
    %v244 = vpop.f32.mrf.mxu0
    %v245 = vadd.f32 %v88, %v244
    %v246 = vpop.f32.mrf.mxu0
    %247 = vdwg.mxu0
    %v248 = vsel %vm164, %v240, -inf
    %249 = vmax.xlane.f32.xlu0 %v248
    %v250 = vpop.xlane.xlu0 %249
    %v251 = vsel %vm164, %v245, -inf
    %252 = vmax.xlane.f32.xlu0 %v251
    %v253 = vpop.xlane.xlu0 %252
    %v254 = vsub.f32 %v240, %v250
    %v255 = vsub.f32 %v245, %v253
    %v256 = vmul.f32 %v254, 1.442695
    %v257 = vpow.pop %v256
    %v258 = vmul.f32 %v255, 1.442695
    %v259 = vpow.pop %v258
    %v260 = vsel %vm164, %v257, 0.0
    %261 = vadd.xlane.f32.xlu0 %v260
    %v262 = vpop.xlane.xlu0 %261
    %v263 = vsel %vm164, %v259, 0.0
    %264 = vadd.xlane.f32.xlu0 %v263
    %v265 = vpop.xlane.xlu0 %264
    %v266 = vrcp.pop %v262
    %v267 = vrcp.pop %v265
    %v268 = vmul.f32 %v257, %v266
    %v269 = vmul.f32 %v259, %v267
    %270 = vrot.lane.b32.xlu0 %v152, 64
    %v271 = vpop.permute.xlu0 %270
    %272 = vrot.lane.b32.xlu0 %v155, 64
    %v273 = vpop.permute.xlu0 %272
    %v277 = vsel %vm164, %v268, 0
    %v280 = vsel %vm164, %v269, 0
    %282 = vmatprep.subr.mxu0 0.0
    %283 = vmatpush1.msra.mxu0 0.0
    %284 = vmatprep.subr.mxu0 0.0
    %285 = vmatpush1.msra.mxu0 0.0
    %286 = vmatprep.subr.mxu0 0.0
    %287 = vmatpush1.msra.mxu0 0.0
    %288 = vmatprep.subr.mxu0 0.0
    %289 = vmatpush1.msra.mxu0 0.0
    %290 = vmatprep.subr.mxu0 0.0
    %291 = vmatpush1.msra.mxu0 0.0
    %292 = vmatprep.subr.mxu0 0.0
    %293 = vmatpush1.msra.mxu0 0.0
    %294 = vmatprep.subr.mxu0 0.0
    %295 = vmatpush1.msra.mxu0 0.0
    %296 = vmatprep.subr.mxu0 0.0
    %297 = vmatpush1.msra.mxu0 0.0
    %298 = vmatprep.subr.mxu0 0.0
    %299 = vmatpush1.msra.mxu0 0.0
    %300 = vmatprep.subr.mxu0 0.0
    %301 = vmatpush1.msra.mxu0 0.0
    %302 = vmatprep.subr.mxu0 0.0
    %303 = vmatpush1.msra.mxu0 0.0
    %304 = vmatprep.subr.mxu0 0.0
    %305 = vmatpush1.msra.mxu0 0.0
    %306 = vmatprep.subr.mxu0 0.0
    %307 = vmatpush1.msra.mxu0 0.0
    %308 = vmatprep.subr.mxu0 0.0
    %309 = vmatpush1.msra.mxu0 0.0
    %310 = vmatprep.subr.mxu0 0.0
    %311 = vmatpush1.msra.mxu0 %v273
    %312 = vmatprep.subr.mxu0 0.0
    %313 = vmatpush1.msra.mxu0 %v271
    %314 = vmatprep.subr.mxu0 0.0
    %315 = vmatpush2.msra.mxu0 0.0
    %316 = vmatprep.subr.mxu0 0.0
    %317 = vmatpush2.msra.mxu0 0.0
    %318 = vmatprep.subr.mxu0 0.0
    %319 = vmatpush2.msra.mxu0 0.0
    %320 = vmatprep.subr.mxu0 0.0
    %321 = vmatpush2.msra.mxu0 0.0
    %322 = vmatprep.subr.mxu0 0.0
    %323 = vmatpush2.msra.mxu0 0.0
    %324 = vmatprep.subr.mxu0 0.0
    %325 = vmatpush2.msra.mxu0 0.0
    %326 = vmatprep.subr.mxu0 0.0
    %327 = vmatpush2.msra.mxu0 0.0
    %328 = vmatprep.subr.mxu0 0.0
    %329 = vmatpush2.msra.mxu0 0.0
    %330 = vmatprep.subr.mxu0 0.0
    %331 = vmatpush2.msra.mxu0 0.0
    %332 = vmatprep.subr.mxu0 0.0
    %333 = vmatpush2.msra.mxu0 0.0
    %334 = vmatprep.subr.mxu0 0.0
    %335 = vmatpush2.msra.mxu0 0.0
    %336 = vmatprep.subr.mxu0 0.0
    %337 = vmatpush2.msra.mxu0 0.0
    %338 = vmatprep.subr.mxu0 0.0
    %339 = vmatpush2.msra.mxu0 0.0
    %340 = vmatprep.subr.mxu0 0.0
    %341 = vmatpush2.msra.mxu0 0.0
    %342 = vmatprep.subr.mxu0 0.0
    %343 = vmatpush2.msra.mxu0 0.0
    %344 = vmatprep.subr.mxu0 0.0
    %345 = vmatpush2.msra.mxu0 0.0
    %346 = vmatprep.mubr.f32.mxu0 0.0
    %347 = vmatmul.mubr.f32.gmra.mxu0 %v277
    %v348 = vpop.f32.mrf.mxu0
    %v349 = vadd.f32 0.0, %v348
    %v350 = vpop.f32.mrf.mxu0
    %351 = vmatprep.mubr.f32.mxu0 0.0
    %352 = vmatmul.mubr.f32.gmra.mxu0 %v280
    %v353 = vpop.f32.mrf.mxu0
    %v354 = vadd.f32 0.0, %v353
    %v355 = vpop.f32.mrf.mxu0
    %356 = vdwg.mxu0
    %v357 = vpack.c.bf16 %v354, %v349
    %v358 = vld [vmem:[%s5] sm:$0xf]
    %v359 = vld [vmem:[%s5 + $0x4] sm:$0xf]
    %360 = vrot.lane.b32.xlu0 %v152, 112
    %v361 = vpop.permute.xlu0 %360
    %362 = vrot.lane.b32.xlu0 %v155, 112
    %v363 = vpop.permute.xlu0 %362
    %364 = vrot.lane.b32.xlu0 %v152, 80
    %v365 = vpop.permute.xlu0 %364
    %366 = vrot.lane.b32.xlu0 %v155, 80
    %v367 = vpop.permute.xlu0 %366
    %v368 = vsel %vm164, %v361, 0
    %v370 = vsel %vm164, %v363, 0
    %v372 = vsel %vm164, %v365, 0
    %v374 = vsel %vm164, %v367, 0
    %376 = vmatprep.subr.mxu0 0.0
    %377 = vmatpush1.xpose.msra.mxu0 0.0
    %378 = vmatprep.subr.mxu0 0.0
    %379 = vmatpush1.xpose.msra.mxu0 0.0
    %380 = vmatprep.subr.mxu0 0.0
    %381 = vmatpush1.xpose.msra.mxu0 0.0
    %382 = vmatprep.subr.mxu0 0.0
    %383 = vmatpush1.xpose.msra.mxu0 0.0
    %384 = vmatprep.subr.mxu0 0.0
    %385 = vmatpush1.xpose.msra.mxu0 0.0
    %386 = vmatprep.subr.mxu0 0.0
    %387 = vmatpush1.xpose.msra.mxu0 0.0
    %388 = vmatprep.subr.mxu0 0.0
    %389 = vmatpush1.xpose.msra.mxu0 0.0
    %390 = vmatprep.subr.mxu0 0.0
    %391 = vmatpush1.xpose.msra.mxu0 0.0
    %392 = vmatprep.subr.mxu0 0.0
    %393 = vmatpush1.xpose.msra.mxu0 0.0
    %394 = vmatprep.subr.mxu0 0.0
    %395 = vmatpush1.xpose.msra.mxu0 0.0
    %396 = vmatprep.subr.mxu0 0.0
    %397 = vmatpush1.xpose.msra.mxu0 0.0
    %398 = vmatprep.subr.mxu0 0.0
    %399 = vmatpush1.xpose.msra.mxu0 0.0
    %400 = vmatprep.subr.mxu0 0.0
    %401 = vmatpush1.xpose.msra.mxu0 0.0
    %402 = vmatprep.subr.mxu0 0.0
    %403 = vmatpush1.xpose.msra.mxu0 0.0
    %404 = vmatprep.subr.mxu0 0.0
    %405 = vmatpush1.xpose.msra.mxu0 %v374
    %406 = vmatprep.subr.mxu0 0.0
    %407 = vmatpush1.xpose.msra.mxu0 %v372
    %408 = vmatprep.subr.mxu0 0.0
    %409 = vmatpush2.xpose.msra.mxu0 0.0
    %410 = vmatprep.subr.mxu0 0.0
    %411 = vmatpush2.xpose.msra.mxu0 0.0
    %412 = vmatprep.subr.mxu0 0.0
    %413 = vmatpush2.xpose.msra.mxu0 0.0
    %414 = vmatprep.subr.mxu0 0.0
    %415 = vmatpush2.xpose.msra.mxu0 0.0
    %416 = vmatprep.subr.mxu0 0.0
    %417 = vmatpush2.xpose.msra.mxu0 0.0
    %418 = vmatprep.subr.mxu0 0.0
    %419 = vmatpush2.xpose.msra.mxu0 0.0
    %420 = vmatprep.subr.mxu0 0.0
    %421 = vmatpush2.xpose.msra.mxu0 0.0
    %422 = vmatprep.subr.mxu0 0.0
    %423 = vmatpush2.xpose.msra.mxu0 0.0
    %424 = vmatprep.subr.mxu0 0.0
    %425 = vmatpush2.xpose.msra.mxu0 0.0
    %426 = vmatprep.subr.mxu0 0.0
    %427 = vmatpush2.xpose.msra.mxu0 0.0
    %428 = vmatprep.subr.mxu0 0.0
    %429 = vmatpush2.xpose.msra.mxu0 0.0
    %430 = vmatprep.subr.mxu0 0.0
    %431 = vmatpush2.xpose.msra.mxu0 0.0
    %432 = vmatprep.subr.mxu0 0.0
    %433 = vmatpush2.xpose.msra.mxu0 0.0
    %434 = vmatprep.subr.mxu0 0.0
    %435 = vmatpush2.xpose.msra.mxu0 0.0
    %436 = vmatprep.subr.mxu0 0.0
    %437 = vmatpush2.xpose.msra.mxu0 0.0
    %438 = vmatprep.subr.mxu0 0.0
    %439 = vmatpush2.xpose.msra.mxu0 0.0
    %440 = vmatprep.mubr.f32.mxu0 0.0
    %441 = vmatmul.mubr.f32.gmra.mxu0 %v368
    %v442 = vpop.f32.mrf.mxu0
    %v443 = vadd.f32 %v87, %v442
    %v444 = vpop.f32.mrf.mxu0
    %445 = vmatprep.mubr.f32.mxu0 0.0
    %446 = vmatmul.mubr.f32.gmra.mxu0 %v370
    %v447 = vpop.f32.mrf.mxu0
    %v448 = vadd.f32 %v88, %v447
    %v449 = vpop.f32.mrf.mxu0
    %450 = vdwg.mxu0
    %v451 = vsel %vm164, %v443, -inf
    %452 = vmax.xlane.f32.xlu0 %v451
    %v453 = vpop.xlane.xlu0 %452
    %v454 = vsel %vm164, %v448, -inf
    %455 = vmax.xlane.f32.xlu0 %v454
    %v456 = vpop.xlane.xlu0 %455
    %v457 = vsub.f32 %v443, %v453
    %v458 = vsub.f32 %v448, %v456
    %v459 = vmul.f32 %v457, 1.442695
    %v460 = vpow.pop %v459
    %v461 = vmul.f32 %v458, 1.442695
    %v462 = vpow.pop %v461
    %v463 = vsel %vm164, %v460, 0.0
    %464 = vadd.xlane.f32.xlu0 %v463
    %v465 = vpop.xlane.xlu0 %464
    %v466 = vsel %vm164, %v462, 0.0
    %467 = vadd.xlane.f32.xlu0 %v466
    %v468 = vpop.xlane.xlu0 %467
    %v469 = vrcp.pop %v465
    %v470 = vrcp.pop %v468
    %v471 = vmul.f32 %v460, %v469
    %v472 = vmul.f32 %v462, %v470
    %473 = vrot.lane.b32.xlu0 %v152, 48
    %v474 = vpop.permute.xlu0 %473
    %475 = vrot.lane.b32.xlu0 %v155, 48
    %v476 = vpop.permute.xlu0 %475
    %v480 = vsel %vm164, %v471, 0
    %v483 = vsel %vm164, %v472, 0
    %485 = vmatprep.subr.mxu0 0.0
    %486 = vmatpush1.msra.mxu0 0.0
    %487 = vmatprep.subr.mxu0 0.0
    %488 = vmatpush1.msra.mxu0 0.0
    %489 = vmatprep.subr.mxu0 0.0
    %490 = vmatpush1.msra.mxu0 0.0
    %491 = vmatprep.subr.mxu0 0.0
    %492 = vmatpush1.msra.mxu0 0.0
    %493 = vmatprep.subr.mxu0 0.0
    %494 = vmatpush1.msra.mxu0 0.0
    %495 = vmatprep.subr.mxu0 0.0
    %496 = vmatpush1.msra.mxu0 0.0
    %497 = vmatprep.subr.mxu0 0.0
    %498 = vmatpush1.msra.mxu0 0.0
    %499 = vmatprep.subr.mxu0 0.0
    %500 = vmatpush1.msra.mxu0 0.0
    %501 = vmatprep.subr.mxu0 0.0
    %502 = vmatpush1.msra.mxu0 0.0
    %503 = vmatprep.subr.mxu0 0.0
    %504 = vmatpush1.msra.mxu0 0.0
    %505 = vmatprep.subr.mxu0 0.0
    %506 = vmatpush1.msra.mxu0 0.0
    %507 = vmatprep.subr.mxu0 0.0
    %508 = vmatpush1.msra.mxu0 0.0
    %509 = vmatprep.subr.mxu0 0.0
    %510 = vmatpush1.msra.mxu0 0.0
    %511 = vmatprep.subr.mxu0 0.0
    %512 = vmatpush1.msra.mxu0 0.0
    %513 = vmatprep.subr.mxu0 0.0
    %514 = vmatpush1.msra.mxu0 %v476
    %515 = vmatprep.subr.mxu0 0.0
    %516 = vmatpush1.msra.mxu0 %v474
    %517 = vmatprep.subr.mxu0 0.0
    %518 = vmatpush2.msra.mxu0 0.0
    %519 = vmatprep.subr.mxu0 0.0
    %520 = vmatpush2.msra.mxu0 0.0
    %521 = vmatprep.subr.mxu0 0.0
    %522 = vmatpush2.msra.mxu0 0.0
    %523 = vmatprep.subr.mxu0 0.0
    %524 = vmatpush2.msra.mxu0 0.0
    %525 = vmatprep.subr.mxu0 0.0
    %526 = vmatpush2.msra.mxu0 0.0
    %527 = vmatprep.subr.mxu0 0.0
    %528 = vmatpush2.msra.mxu0 0.0
    %529 = vmatprep.subr.mxu0 0.0
    %530 = vmatpush2.msra.mxu0 0.0
    %531 = vmatprep.subr.mxu0 0.0
    %532 = vmatpush2.msra.mxu0 0.0
    %533 = vmatprep.subr.mxu0 0.0
    %534 = vmatpush2.msra.mxu0 0.0
    %535 = vmatprep.subr.mxu0 0.0
    %536 = vmatpush2.msra.mxu0 0.0
    %537 = vmatprep.subr.mxu0 0.0
    %538 = vmatpush2.msra.mxu0 0.0
    %539 = vmatprep.subr.mxu0 0.0
    %540 = vmatpush2.msra.mxu0 0.0
    %541 = vmatprep.subr.mxu0 0.0
    %542 = vmatpush2.msra.mxu0 0.0
    %543 = vmatprep.subr.mxu0 0.0
    %544 = vmatpush2.msra.mxu0 0.0
    %545 = vmatprep.subr.mxu0 0.0
    %546 = vmatpush2.msra.mxu0 0.0
    %547 = vmatprep.subr.mxu0 0.0
    %548 = vmatpush2.msra.mxu0 0.0
    %549 = vmatprep.mubr.f32.mxu0 0.0
    %550 = vmatmul.mubr.f32.gmra.mxu0 %v480
    %v551 = vpop.f32.mrf.mxu0
    %v552 = vadd.f32 0.0, %v551
    %v553 = vpop.f32.mrf.mxu0
    %554 = vmatprep.mubr.f32.mxu0 0.0
    %555 = vmatmul.mubr.f32.gmra.mxu0 %v483
    %v556 = vpop.f32.mrf.mxu0
    %v557 = vadd.f32 0.0, %v556
    %v558 = vpop.f32.mrf.mxu0
    %559 = vdwg.mxu0
    %v560 = vpack.c.bf16 %v557, %v552
    %v561 = vld [vmem:[%s5 + $0x8] sm:$0xf]
    %v562 = vld [vmem:[%s5 + $0xc] sm:$0xf]
    %v565 = vunpack.c.l.b16 %v561
    %v566 = vunpack.c.l.b16 %v562
    %v567 = vpack.c.b16 %v566, %v565
    %v570 = vsel %vm164, %v560, 0
    %572 = vmatprep.subr.bf16.mxu0 0
    %573 = vmatpush1.bf16.msra.mxu0 0
    %574 = vmatprep.subr.bf16.mxu0 0
    %575 = vmatpush1.bf16.msra.mxu0 0
    %576 = vmatprep.subr.bf16.mxu0 0
    %577 = vmatpush1.bf16.msra.mxu0 0
    %578 = vmatprep.subr.bf16.mxu0 0
    %579 = vmatpush1.bf16.msra.mxu0 0
    %580 = vmatprep.subr.bf16.mxu0 0
    %581 = vmatpush1.bf16.msra.mxu0 0
    %582 = vmatprep.subr.bf16.mxu0 0
    %583 = vmatpush1.bf16.msra.mxu0 0
    %584 = vmatprep.subr.bf16.mxu0 0
    %585 = vmatpush1.bf16.msra.mxu0 0
    %586 = vmatprep.subr.bf16.mxu0 0
    %587 = vmatpush1.bf16.msra.mxu0 %v567
    %588 = vmatprep.subr.bf16.mxu0 0
    %589 = vmatpush2.bf16.msra.mxu0 0
    %590 = vmatprep.subr.bf16.mxu0 0
    %591 = vmatpush2.bf16.msra.mxu0 0
    %592 = vmatprep.subr.bf16.mxu0 0
    %593 = vmatpush2.bf16.msra.mxu0 0
    %594 = vmatprep.subr.bf16.mxu0 0
    %595 = vmatpush2.bf16.msra.mxu0 0
    %596 = vmatprep.subr.bf16.mxu0 0
    %597 = vmatpush2.bf16.msra.mxu0 0
    %598 = vmatprep.subr.bf16.mxu0 0
    %599 = vmatpush2.bf16.msra.mxu0 0
    %600 = vmatprep.subr.bf16.mxu0 0
    %601 = vmatpush2.bf16.msra.mxu0 0
    %602 = vmatprep.subr.bf16.mxu0 0
    %603 = vmatpush2.bf16.msra.mxu0 0
    %604 = vmatprep.mubr.bf16.mxu0 0
    %605 = vmatmul.mubr.bf16.gmra.mxu0 %v570
    %v606 = vpop.f32.mrf.mxu0
    %v607 = vadd.f32 0.0, %v606
    %v608 = vpop.f32.mrf.mxu0
    %v609 = vpop.f32.mrf.mxu0
    %v610 = vadd.f32 0.0, %v609
    %v611 = vpop.f32.mrf.mxu0
    %612 = vdwg.mxu0
    %v615 = vunpack.c.l.b16 %v358
    %v616 = vunpack.c.l.b16 %v359
    %v617 = vpack.c.b16 %v616, %v615
    %v620 = vsel %vm164, %v357, 0
    %622 = vmatprep.subr.bf16.mxu0 0
    %623 = vmatpush1.bf16.msra.mxu0 0
    %624 = vmatprep.subr.bf16.mxu0 0
    %625 = vmatpush1.bf16.msra.mxu0 0
    %626 = vmatprep.subr.bf16.mxu0 0
    %627 = vmatpush1.bf16.msra.mxu0 0
    %628 = vmatprep.subr.bf16.mxu0 0
    %629 = vmatpush1.bf16.msra.mxu0 0
    %630 = vmatprep.subr.bf16.mxu0 0
    %631 = vmatpush1.bf16.msra.mxu0 0
    %632 = vmatprep.subr.bf16.mxu0 0
    %633 = vmatpush1.bf16.msra.mxu0 0
    %634 = vmatprep.subr.bf16.mxu0 0
    %635 = vmatpush1.bf16.msra.mxu0 0
    %636 = vmatprep.subr.bf16.mxu0 0
    %637 = vmatpush1.bf16.msra.mxu0 %v617
    %638 = vmatprep.subr.bf16.mxu0 0
    %639 = vmatpush2.bf16.msra.mxu0 0
    %640 = vmatprep.subr.bf16.mxu0 0
    %641 = vmatpush2.bf16.msra.mxu0 0
    %642 = vmatprep.subr.bf16.mxu0 0
    %643 = vmatpush2.bf16.msra.mxu0 0
    %644 = vmatprep.subr.bf16.mxu0 0
    %645 = vmatpush2.bf16.msra.mxu0 0
    %646 = vmatprep.subr.bf16.mxu0 0
    %647 = vmatpush2.bf16.msra.mxu0 0
    %648 = vmatprep.subr.bf16.mxu0 0
    %649 = vmatpush2.bf16.msra.mxu0 0
    %650 = vmatprep.subr.bf16.mxu0 0
    %651 = vmatpush2.bf16.msra.mxu0 0
    %652 = vmatprep.subr.bf16.mxu0 0
    %653 = vmatpush2.bf16.msra.mxu0 0
    %654 = vmatprep.mubr.bf16.mxu0 0
    %655 = vmatmul.mubr.bf16.gmra.mxu0 %v620
    %v656 = vpop.f32.mrf.mxu0
    %v657 = vadd.f32 %v607, %v656
    %v658 = vpop.f32.mrf.mxu0
    %v659 = vpop.f32.mrf.mxu0
    %v660 = vadd.f32 %v610, %v659
    %v661 = vpop.f32.mrf.mxu0
    %662 = vdwg.mxu0
    %v663 = vlaneseq
    %v664 = vshrl.u32 %v663, 7
    %v665 = vsub.s32 0, %v664
    %v666 = vrot.slane %v89, %v665
    %v667 = vadd.f32 %v657, %v666
    %v668 = vadd.f32 %v660, %v666
    %v669 = vadd.f32 %v667, %v85
    %v670 = vadd.f32 %v668, %v86
    %v671 = vsel %vm47, %v669, 0.0
    %672 = vadd.xlane.f32.xlu0 %v671
    %v673 = vpop.xlane.xlu0 %672
    %v674 = vsel %vm47, %v670, 0.0
    %675 = vadd.xlane.f32.xlu0 %v674
    %v676 = vpop.xlane.xlu0 %675
    %v677 = vmul.f32 %v673, %v54
    %v678 = vmul.f32 %v676, %v54
    %v679 = vsub.f32 %v669, %v677
    %v680 = vsub.f32 %v670, %v678
    %v681 = vmul.f32 %v679, %v679
    %v682 = vmul.f32 %v680, %v680
    %v683 = vsel %vm47, %v681, 0.0
    %684 = vadd.xlane.f32.xlu0 %v683
    %v685 = vpop.xlane.xlu0 %684
    %v686 = vsel %vm47, %v682, 0.0
    %687 = vadd.xlane.f32.xlu0 %v686
    %v688 = vpop.xlane.xlu0 %687
    %v689 = vmul.f32 %v685, %v54
    %v690 = vmul.f32 %v688, %v54
    %v691 = vadd.f32 %v689, 1e-12
    %v692 = vadd.f32 %v690, 1e-12
    %v693 = vrsqrt.pop %v691
    %v694 = vrsqrt.pop %v692
    %v695 = vmul.f32 %v679, %v693
    %v696 = vmul.f32 %v680, %v694
    %v697 = vlaneseq
    %v698 = vshrl.u32 %v697, 7
    %v699 = vsub.s32 1, %v698
    %v700 = vrot.slane %v89, %v699
    %v701 = vmul.f32 %v695, %v700
    %v702 = vmul.f32 %v696, %v700
    %v703 = vlaneseq
    %v704 = vshrl.u32 %v703, 7
    %v705 = vsub.s32 2, %v704
    %v706 = vrot.slane %v89, %v705
    %v707 = vadd.f32 %v701, %v706
    %v708 = vadd.f32 %v702, %v706
    %v709 = vpack.c.bf16 %v708, %v707
    %v710 = vld [vmem:[%s6] sm:$0xf]
    %v711 = vld [vmem:[%s6 + $0x4] sm:$0xf]
    %v712 = vld [vmem:[%s6 + $0x8] sm:$0xf]
    %v713 = vld [vmem:[%s6 + $0xc] sm:$0xf]
    %v714 = vld [vmem:[%s7] sm:$0x1]
    %v716 = vlaneseq
    %v717 = vshrl.u32 %v716, 7
    %v718 = vsub.s32 0, %v717
    %v719 = vrot.slane %v714, %v718
    %v725 = vunpack.c.l.b16 %v710
    %v726 = vunpack.c.l.b16 %v711
    %v727 = vunpack.c.l.b16 %v712
    %v728 = vunpack.c.l.b16 %v713
    %v729 = vpack.c.b16 %v726, %v725
    %v730 = vpack.c.b16 %v728, %v727
    %v734 = vsel %vm47, %v709, 0
    %736 = vmatprep.subr.bf16.mxu0 0
    %737 = vmatpush1.bf16.msra.mxu0 0
    %738 = vmatprep.subr.bf16.mxu0 0
    %739 = vmatpush1.bf16.msra.mxu0 0
    %740 = vmatprep.subr.bf16.mxu0 0
    %741 = vmatpush1.bf16.msra.mxu0 0
    %742 = vmatprep.subr.bf16.mxu0 0
    %743 = vmatpush1.bf16.msra.mxu0 0
    %744 = vmatprep.subr.bf16.mxu0 0
    %745 = vmatpush1.bf16.msra.mxu0 0
    %746 = vmatprep.subr.bf16.mxu0 0
    %747 = vmatpush1.bf16.msra.mxu0 0
    %748 = vmatprep.subr.bf16.mxu0 0
    %749 = vmatpush1.bf16.msra.mxu0 %v730
    %750 = vmatprep.subr.bf16.mxu0 0
    %751 = vmatpush1.bf16.msra.mxu0 %v729
    %752 = vmatprep.subr.bf16.mxu0 0
    %753 = vmatpush2.bf16.msra.mxu0 0
    %754 = vmatprep.subr.bf16.mxu0 0
    %755 = vmatpush2.bf16.msra.mxu0 0
    %756 = vmatprep.subr.bf16.mxu0 0
    %757 = vmatpush2.bf16.msra.mxu0 0
    %758 = vmatprep.subr.bf16.mxu0 0
    %759 = vmatpush2.bf16.msra.mxu0 0
    %760 = vmatprep.subr.bf16.mxu0 0
    %761 = vmatpush2.bf16.msra.mxu0 0
    %762 = vmatprep.subr.bf16.mxu0 0
    %763 = vmatpush2.bf16.msra.mxu0 0
    %764 = vmatprep.subr.bf16.mxu0 0
    %765 = vmatpush2.bf16.msra.mxu0 0
    %766 = vmatprep.subr.bf16.mxu0 0
    %767 = vmatpush2.bf16.msra.mxu0 0
    %768 = vmatprep.mubr.bf16.mxu0 0
    %769 = vmatmul.mubr.bf16.gmra.mxu0 %v734
    %v770 = vpop.f32.mrf.mxu0
    %v771 = vadd.f32 %v719, %v770
    %v772 = vpop.f32.mrf.mxu0
    %v773 = vpop.f32.mrf.mxu0
    %v774 = vadd.f32 %v719, %v773
    %v775 = vpop.f32.mrf.mxu0
    %776 = vdwg.mxu0
    %v777 = vmul.f32 %v771, %v771
    %v778 = vmul.f32 %v774, %v774
    %v779 = vmul.f32 %v771, %v777
    %v780 = vmul.f32 %v774, %v778
    %v781 = vmul.f32 %v779, 0.044715
    %v782 = vmul.f32 %v780, 0.044715
    %v783 = vadd.f32 %v771, %v781
    %v784 = vadd.f32 %v774, %v782
    %v785 = vmul.f32 %v783, 0.7978846
    %v786 = vmul.f32 %v784, 0.7978846
    %v787 = vtanh.pop %v785
    %v788 = vtanh.pop %v786
    %v789 = vadd.f32 %v787, 1.0
    %v790 = vadd.f32 %v788, 1.0
    %v791 = vmul.f32 %v789, 0.5
    %v792 = vmul.f32 %v790, 0.5
    %v793 = vmul.f32 %v771, %v791
    %v794 = vmul.f32 %v774, %v792
    %v795 = vpack.c.bf16 %v794, %v793
    %v796 = vld [vmem:[%s8] sm:$0xf]
    %v797 = vld [vmem:[%s8 + $0x4] sm:$0xf]
    %v798 = vld [vmem:[%s8 + $0x8] sm:$0xf]
    %v799 = vld [vmem:[%s8 + $0xc] sm:$0xf]
    %v800 = vld [vmem:[%s8 + $0x10] sm:$0xf]
    %v801 = vld [vmem:[%s8 + $0x14] sm:$0xf]
    %v802 = vld [vmem:[%s8 + $0x18] sm:$0xf]
    %v803 = vld [vmem:[%s8 + $0x1c] sm:$0xf]
    %v804 = vlaneseq
    %v805 = vshrl.u32 %v804, 7
    %v806 = vsub.s32 3, %v805
    %v807 = vrot.slane %v89, %v806
    %v816 = vunpack.c.l.b16 %v796
    %v817 = vunpack.c.l.b16 %v797
    %v818 = vunpack.c.l.b16 %v798
    %v819 = vunpack.c.l.b16 %v799
    %v820 = vunpack.c.l.b16 %v800
    %v821 = vunpack.c.l.b16 %v801
    %v822 = vunpack.c.l.b16 %v802
    %v823 = vunpack.c.l.b16 %v803
    %v824 = vpack.c.b16 %v817, %v816
    %v825 = vpack.c.b16 %v819, %v818
    %v826 = vpack.c.b16 %v821, %v820
    %v827 = vpack.c.b16 %v823, %v822
    %vm832 = vcmask 523264
    %v834 = vsel %vm832, %v795, 0
    %836 = vmatprep.subr.bf16.mxu0 0
    %837 = vmatpush1.bf16.msra.mxu0 0
    %838 = vmatprep.subr.bf16.mxu0 0
    %839 = vmatpush1.bf16.msra.mxu0 0
    %840 = vmatprep.subr.bf16.mxu0 0
    %841 = vmatpush1.bf16.msra.mxu0 0
    %842 = vmatprep.subr.bf16.mxu0 0
    %843 = vmatpush1.bf16.msra.mxu0 0
    %844 = vmatprep.subr.bf16.mxu0 0
    %845 = vmatpush1.bf16.msra.mxu0 %v827
    %846 = vmatprep.subr.bf16.mxu0 0
    %847 = vmatpush1.bf16.msra.mxu0 %v826
    %848 = vmatprep.subr.bf16.mxu0 0
    %849 = vmatpush1.bf16.msra.mxu0 %v825
    %850 = vmatprep.subr.bf16.mxu0 0
    %851 = vmatpush1.bf16.msra.mxu0 %v824
    %852 = vmatprep.subr.bf16.mxu0 0
    %853 = vmatpush2.bf16.msra.mxu0 0
    %854 = vmatprep.subr.bf16.mxu0 0
    %855 = vmatpush2.bf16.msra.mxu0 0
    %856 = vmatprep.subr.bf16.mxu0 0
    %857 = vmatpush2.bf16.msra.mxu0 0
    %858 = vmatprep.subr.bf16.mxu0 0
    %859 = vmatpush2.bf16.msra.mxu0 0
    %860 = vmatprep.subr.bf16.mxu0 0
    %861 = vmatpush2.bf16.msra.mxu0 0
    %862 = vmatprep.subr.bf16.mxu0 0
    %863 = vmatpush2.bf16.msra.mxu0 0
    %864 = vmatprep.subr.bf16.mxu0 0
    %865 = vmatpush2.bf16.msra.mxu0 0
    %866 = vmatprep.subr.bf16.mxu0 0
    %867 = vmatpush2.bf16.msra.mxu0 0
    %868 = vmatprep.mubr.bf16.mxu0 0
    %869 = vmatmul.mubr.bf16.gmra.mxu0 %v834
    %v870 = vpop.f32.mrf.mxu0
    %v871 = vadd.f32 %v807, %v870
    %v872 = vpop.f32.mrf.mxu0
    %v873 = vpop.f32.mrf.mxu0
    %v874 = vadd.f32 %v807, %v873
    %v875 = vpop.f32.mrf.mxu0
    %876 = vdwg.mxu0
    %v877 = vadd.f32 %v871, %v707
    %v878 = vadd.f32 %v874, %v708
    %v879 = vsel %vm47, %v877, 0.0
    %880 = vadd.xlane.f32.xlu0 %v879
    %v881 = vpop.xlane.xlu0 %880
    %v882 = vsel %vm47, %v878, 0.0
    %883 = vadd.xlane.f32.xlu0 %v882
    %v884 = vpop.xlane.xlu0 %883
    %v885 = vmul.f32 %v881, %v54
    %v886 = vmul.f32 %v884, %v54
    %v887 = vsub.f32 %v877, %v885
    %v888 = vsub.f32 %v878, %v886
    %v889 = vmul.f32 %v887, %v887
    %v890 = vmul.f32 %v888, %v888
    %v891 = vsel %vm47, %v889, 0.0
    %892 = vadd.xlane.f32.xlu0 %v891
    %v893 = vpop.xlane.xlu0 %892
    %v894 = vsel %vm47, %v890, 0.0
    %895 = vadd.xlane.f32.xlu0 %v894
    %v896 = vpop.xlane.xlu0 %895
    %v897 = vmul.f32 %v893, %v54
    %v898 = vmul.f32 %v896, %v54
    %v899 = vadd.f32 %v897, 1e-12
    %v900 = vadd.f32 %v898, 1e-12
    %v901 = vrsqrt.pop %v899
    %v902 = vrsqrt.pop %v900
    %v903 = vmul.f32 %v887, %v901
    %v904 = vmul.f32 %v888, %v902
    %v905 = vlaneseq
    %v906 = vshrl.u32 %v905, 7
    %v907 = vsub.s32 4, %v906
    %v908 = vrot.slane %v89, %v907
    %v909 = vmul.f32 %v903, %v908
    %v910 = vmul.f32 %v904, %v908
    %v911 = vlaneseq
    %v912 = vshrl.u32 %v911, 7
    %v913 = vsub.s32 5, %v912
    %v914 = vrot.slane %v89, %v913
    %v915 = vadd.f32 %v909, %v914
    %v916 = vadd.f32 %v910, %v914
    %s917 = scalar_lea.vmem %s9, 8
    %v918 = vld [vmem:[%s917] sm:$0x3f]
    %v919 = vpack.c.bf16 %v916, %v915
    %s920 = scalar_lea.vmem %s3, 16
    %v921 = vld [vmem:[%s920] sm:$0xf]
    %v922 = vld [vmem:[%s920 + $0x4] sm:$0xf]
    %v923 = vld [vmem:[%s920 + $0x8] sm:$0xf]
    %v924 = vld [vmem:[%s920 + $0xc] sm:$0xf]
    %s925 = scalar_lea.vmem %s4, 1
    %v926 = vld [vmem:[%s925] sm:$0x1]
    %v928 = vlaneseq
    %v929 = vshrl.u32 %v928, 7
    %v930 = vsub.s32 0, %v929
    %v931 = vrot.slane %v926, %v930
    %v937 = vunpack.c.l.b16 %v921
    %v938 = vunpack.c.l.b16 %v922
    %v939 = vunpack.c.l.b16 %v923
    %v940 = vunpack.c.l.b16 %v924
    %v941 = vpack.c.b16 %v938, %v937
    %v942 = vpack.c.b16 %v940, %v939
    %v946 = vsel %vm47, %v919, 0
    %948 = vmatprep.subr.bf16.mxu0 0
    %949 = vmatpush1.bf16.msra.mxu0 0
    %950 = vmatprep.subr.bf16.mxu0 0
    %951 = vmatpush1.bf16.msra.mxu0 0
    %952 = vmatprep.subr.bf16.mxu0 0
    %953 = vmatpush1.bf16.msra.mxu0 0
    %954 = vmatprep.subr.bf16.mxu0 0
    %955 = vmatpush1.bf16.msra.mxu0 0
    %956 = vmatprep.subr.bf16.mxu0 0
    %957 = vmatpush1.bf16.msra.mxu0 0
    %958 = vmatprep.subr.bf16.mxu0 0
    %959 = vmatpush1.bf16.msra.mxu0 0
    %960 = vmatprep.subr.bf16.mxu0 0
    %961 = vmatpush1.bf16.msra.mxu0 %v942
    %962 = vmatprep.subr.bf16.mxu0 0
    %963 = vmatpush1.bf16.msra.mxu0 %v941
    %964 = vmatprep.subr.bf16.mxu0 0
    %965 = vmatpush2.bf16.msra.mxu0 0
    %966 = vmatprep.subr.bf16.mxu0 0
    %967 = vmatpush2.bf16.msra.mxu0 0
    %968 = vmatprep.subr.bf16.mxu0 0
    %969 = vmatpush2.bf16.msra.mxu0 0
    %970 = vmatprep.subr.bf16.mxu0 0
    %971 = vmatpush2.bf16.msra.mxu0 0
    %972 = vmatprep.subr.bf16.mxu0 0
    %973 = vmatpush2.bf16.msra.mxu0 0
    %974 = vmatprep.subr.bf16.mxu0 0
    %975 = vmatpush2.bf16.msra.mxu0 0
    %976 = vmatprep.subr.bf16.mxu0 0
    %977 = vmatpush2.bf16.msra.mxu0 0
    %978 = vmatprep.subr.bf16.mxu0 0
    %979 = vmatpush2.bf16.msra.mxu0 0
    %980 = vmatprep.mubr.bf16.mxu0 0
    %981 = vmatmul.mubr.bf16.gmra.mxu0 %v946
    %v982 = vpop.f32.mrf.mxu0
    %v983 = vadd.f32 %v931, %v982
    %v984 = vpop.f32.mrf.mxu0
    %v985 = vpop.f32.mrf.mxu0
    %v986 = vadd.f32 %v931, %v985
    %v987 = vpop.f32.mrf.mxu0
    %988 = vdwg.mxu0
    %991 = vrot.lane.b32.xlu0 %v983, 96
    %v992 = vpop.permute.xlu0 %991
    %993 = vrot.lane.b32.xlu0 %v986, 96
    %v994 = vpop.permute.xlu0 %993
    %v995 = vsel %vm164, %v983, 0
    %v997 = vsel %vm164, %v986, 0
    %v999 = vsel %vm164, %v992, 0
    %v1001 = vsel %vm164, %v994, 0
    %1003 = vmatprep.subr.mxu0 0.0
    %1004 = vmatpush1.xpose.msra.mxu0 0.0
    %1005 = vmatprep.subr.mxu0 0.0
    %1006 = vmatpush1.xpose.msra.mxu0 0.0
    %1007 = vmatprep.subr.mxu0 0.0
    %1008 = vmatpush1.xpose.msra.mxu0 0.0
    %1009 = vmatprep.subr.mxu0 0.0
    %1010 = vmatpush1.xpose.msra.mxu0 0.0
    %1011 = vmatprep.subr.mxu0 0.0
    %1012 = vmatpush1.xpose.msra.mxu0 0.0
    %1013 = vmatprep.subr.mxu0 0.0
    %1014 = vmatpush1.xpose.msra.mxu0 0.0
    %1015 = vmatprep.subr.mxu0 0.0
    %1016 = vmatpush1.xpose.msra.mxu0 0.0
    %1017 = vmatprep.subr.mxu0 0.0
    %1018 = vmatpush1.xpose.msra.mxu0 0.0
    %1019 = vmatprep.subr.mxu0 0.0
    %1020 = vmatpush1.xpose.msra.mxu0 0.0
    %1021 = vmatprep.subr.mxu0 0.0
    %1022 = vmatpush1.xpose.msra.mxu0 0.0
    %1023 = vmatprep.subr.mxu0 0.0
    %1024 = vmatpush1.xpose.msra.mxu0 0.0
    %1025 = vmatprep.subr.mxu0 0.0
    %1026 = vmatpush1.xpose.msra.mxu0 0.0
    %1027 = vmatprep.subr.mxu0 0.0
    %1028 = vmatpush1.xpose.msra.mxu0 0.0
    %1029 = vmatprep.subr.mxu0 0.0
    %1030 = vmatpush1.xpose.msra.mxu0 0.0
    %1031 = vmatprep.subr.mxu0 0.0
    %1032 = vmatpush1.xpose.msra.mxu0 %v1001
    %1033 = vmatprep.subr.mxu0 0.0
    %1034 = vmatpush1.xpose.msra.mxu0 %v999
    %1035 = vmatprep.subr.mxu0 0.0
    %1036 = vmatpush2.xpose.msra.mxu0 0.0
    %1037 = vmatprep.subr.mxu0 0.0
    %1038 = vmatpush2.xpose.msra.mxu0 0.0
    %1039 = vmatprep.subr.mxu0 0.0
    %1040 = vmatpush2.xpose.msra.mxu0 0.0
    %1041 = vmatprep.subr.mxu0 0.0
    %1042 = vmatpush2.xpose.msra.mxu0 0.0
    %1043 = vmatprep.subr.mxu0 0.0
    %1044 = vmatpush2.xpose.msra.mxu0 0.0
    %1045 = vmatprep.subr.mxu0 0.0
    %1046 = vmatpush2.xpose.msra.mxu0 0.0
    %1047 = vmatprep.subr.mxu0 0.0
    %1048 = vmatpush2.xpose.msra.mxu0 0.0
    %1049 = vmatprep.subr.mxu0 0.0
    %1050 = vmatpush2.xpose.msra.mxu0 0.0
    %1051 = vmatprep.subr.mxu0 0.0
    %1052 = vmatpush2.xpose.msra.mxu0 0.0
    %1053 = vmatprep.subr.mxu0 0.0
    %1054 = vmatpush2.xpose.msra.mxu0 0.0
    %1055 = vmatprep.subr.mxu0 0.0
    %1056 = vmatpush2.xpose.msra.mxu0 0.0
    %1057 = vmatprep.subr.mxu0 0.0
    %1058 = vmatpush2.xpose.msra.mxu0 0.0
    %1059 = vmatprep.subr.mxu0 0.0
    %1060 = vmatpush2.xpose.msra.mxu0 0.0
    %1061 = vmatprep.subr.mxu0 0.0
    %1062 = vmatpush2.xpose.msra.mxu0 0.0
    %1063 = vmatprep.subr.mxu0 0.0
    %1064 = vmatpush2.xpose.msra.mxu0 0.0
    %1065 = vmatprep.subr.mxu0 0.0
    %1066 = vmatpush2.xpose.msra.mxu0 0.0
    %1067 = vmatprep.mubr.f32.mxu0 0.0
    %1068 = vmatmul.mubr.f32.gmra.mxu0 %v995
    %v1069 = vpop.f32.mrf.mxu0
    %v1070 = vadd.f32 %v87, %v1069
    %v1071 = vpop.f32.mrf.mxu0
    %1072 = vmatprep.mubr.f32.mxu0 0.0
    %1073 = vmatmul.mubr.f32.gmra.mxu0 %v997
    %v1074 = vpop.f32.mrf.mxu0
    %v1075 = vadd.f32 %v88, %v1074
    %v1076 = vpop.f32.mrf.mxu0
    %1077 = vdwg.mxu0
    %v1078 = vsel %vm164, %v1070, -inf
    %1079 = vmax.xlane.f32.xlu0 %v1078
    %v1080 = vpop.xlane.xlu0 %1079
    %v1081 = vsel %vm164, %v1075, -inf
    %1082 = vmax.xlane.f32.xlu0 %v1081
    %v1083 = vpop.xlane.xlu0 %1082
    %v1084 = vsub.f32 %v1070, %v1080
    %v1085 = vsub.f32 %v1075, %v1083
    %v1086 = vmul.f32 %v1084, 1.442695
    %v1087 = vpow.pop %v1086
    %v1088 = vmul.f32 %v1085, 1.442695
    %v1089 = vpow.pop %v1088
    %v1090 = vsel %vm164, %v1087, 0.0
    %1091 = vadd.xlane.f32.xlu0 %v1090
    %v1092 = vpop.xlane.xlu0 %1091
    %v1093 = vsel %vm164, %v1089, 0.0
    %1094 = vadd.xlane.f32.xlu0 %v1093
    %v1095 = vpop.xlane.xlu0 %1094
    %v1096 = vrcp.pop %v1092
    %v1097 = vrcp.pop %v1095
    %v1098 = vmul.f32 %v1087, %v1096
    %v1099 = vmul.f32 %v1089, %v1097
    %1100 = vrot.lane.b32.xlu0 %v983, 64
    %v1101 = vpop.permute.xlu0 %1100
    %1102 = vrot.lane.b32.xlu0 %v986, 64
    %v1103 = vpop.permute.xlu0 %1102
    %v1107 = vsel %vm164, %v1098, 0
    %v1110 = vsel %vm164, %v1099, 0
    %1112 = vmatprep.subr.mxu0 0.0
    %1113 = vmatpush1.msra.mxu0 0.0
    %1114 = vmatprep.subr.mxu0 0.0
    %1115 = vmatpush1.msra.mxu0 0.0
    %1116 = vmatprep.subr.mxu0 0.0
    %1117 = vmatpush1.msra.mxu0 0.0
    %1118 = vmatprep.subr.mxu0 0.0
    %1119 = vmatpush1.msra.mxu0 0.0
    %1120 = vmatprep.subr.mxu0 0.0
    %1121 = vmatpush1.msra.mxu0 0.0
    %1122 = vmatprep.subr.mxu0 0.0
    %1123 = vmatpush1.msra.mxu0 0.0
    %1124 = vmatprep.subr.mxu0 0.0
    %1125 = vmatpush1.msra.mxu0 0.0
    %1126 = vmatprep.subr.mxu0 0.0
    %1127 = vmatpush1.msra.mxu0 0.0
    %1128 = vmatprep.subr.mxu0 0.0
    %1129 = vmatpush1.msra.mxu0 0.0
    %1130 = vmatprep.subr.mxu0 0.0
    %1131 = vmatpush1.msra.mxu0 0.0
    %1132 = vmatprep.subr.mxu0 0.0
    %1133 = vmatpush1.msra.mxu0 0.0
    %1134 = vmatprep.subr.mxu0 0.0
    %1135 = vmatpush1.msra.mxu0 0.0
    %1136 = vmatprep.subr.mxu0 0.0
    %1137 = vmatpush1.msra.mxu0 0.0
    %1138 = vmatprep.subr.mxu0 0.0
    %1139 = vmatpush1.msra.mxu0 0.0
    %1140 = vmatprep.subr.mxu0 0.0
    %1141 = vmatpush1.msra.mxu0 %v1103
    %1142 = vmatprep.subr.mxu0 0.0
    %1143 = vmatpush1.msra.mxu0 %v1101
    %1144 = vmatprep.subr.mxu0 0.0
    %1145 = vmatpush2.msra.mxu0 0.0
    %1146 = vmatprep.subr.mxu0 0.0
    %1147 = vmatpush2.msra.mxu0 0.0
    %1148 = vmatprep.subr.mxu0 0.0
    %1149 = vmatpush2.msra.mxu0 0.0
    %1150 = vmatprep.subr.mxu0 0.0
    %1151 = vmatpush2.msra.mxu0 0.0
    %1152 = vmatprep.subr.mxu0 0.0
    %1153 = vmatpush2.msra.mxu0 0.0
    %1154 = vmatprep.subr.mxu0 0.0
    %1155 = vmatpush2.msra.mxu0 0.0
    %1156 = vmatprep.subr.mxu0 0.0
    %1157 = vmatpush2.msra.mxu0 0.0
    %1158 = vmatprep.subr.mxu0 0.0
    %1159 = vmatpush2.msra.mxu0 0.0
    %1160 = vmatprep.subr.mxu0 0.0
    %1161 = vmatpush2.msra.mxu0 0.0
    %1162 = vmatprep.subr.mxu0 0.0
    %1163 = vmatpush2.msra.mxu0 0.0
    %1164 = vmatprep.subr.mxu0 0.0
    %1165 = vmatpush2.msra.mxu0 0.0
    %1166 = vmatprep.subr.mxu0 0.0
    %1167 = vmatpush2.msra.mxu0 0.0
    %1168 = vmatprep.subr.mxu0 0.0
    %1169 = vmatpush2.msra.mxu0 0.0
    %1170 = vmatprep.subr.mxu0 0.0
    %1171 = vmatpush2.msra.mxu0 0.0
    %1172 = vmatprep.subr.mxu0 0.0
    %1173 = vmatpush2.msra.mxu0 0.0
    %1174 = vmatprep.subr.mxu0 0.0
    %1175 = vmatpush2.msra.mxu0 0.0
    %1176 = vmatprep.mubr.f32.mxu0 0.0
    %1177 = vmatmul.mubr.f32.gmra.mxu0 %v1107
    %v1178 = vpop.f32.mrf.mxu0
    %v1179 = vadd.f32 0.0, %v1178
    %v1180 = vpop.f32.mrf.mxu0
    %1181 = vmatprep.mubr.f32.mxu0 0.0
    %1182 = vmatmul.mubr.f32.gmra.mxu0 %v1110
    %v1183 = vpop.f32.mrf.mxu0
    %v1184 = vadd.f32 0.0, %v1183
    %v1185 = vpop.f32.mrf.mxu0
    %1186 = vdwg.mxu0
    %v1187 = vpack.c.bf16 %v1184, %v1179
    %s1188 = scalar_lea.vmem %s5, 16
    %v1189 = vld [vmem:[%s1188] sm:$0xf]
    %v1190 = vld [vmem:[%s1188 + $0x4] sm:$0xf]
    %1191 = vrot.lane.b32.xlu0 %v983, 112
    %v1192 = vpop.permute.xlu0 %1191
    %1193 = vrot.lane.b32.xlu0 %v986, 112
    %v1194 = vpop.permute.xlu0 %1193
    %1195 = vrot.lane.b32.xlu0 %v983, 80
    %v1196 = vpop.permute.xlu0 %1195
    %1197 = vrot.lane.b32.xlu0 %v986, 80
    %v1198 = vpop.permute.xlu0 %1197
    %v1199 = vsel %vm164, %v1192, 0
    %v1201 = vsel %vm164, %v1194, 0
    %v1203 = vsel %vm164, %v1196, 0
    %v1205 = vsel %vm164, %v1198, 0
    %1207 = vmatprep.subr.mxu0 0.0
    %1208 = vmatpush1.xpose.msra.mxu0 0.0
    %1209 = vmatprep.subr.mxu0 0.0
    %1210 = vmatpush1.xpose.msra.mxu0 0.0
    %1211 = vmatprep.subr.mxu0 0.0
    %1212 = vmatpush1.xpose.msra.mxu0 0.0
    %1213 = vmatprep.subr.mxu0 0.0
    %1214 = vmatpush1.xpose.msra.mxu0 0.0
    %1215 = vmatprep.subr.mxu0 0.0
    %1216 = vmatpush1.xpose.msra.mxu0 0.0
    %1217 = vmatprep.subr.mxu0 0.0
    %1218 = vmatpush1.xpose.msra.mxu0 0.0
    %1219 = vmatprep.subr.mxu0 0.0
    %1220 = vmatpush1.xpose.msra.mxu0 0.0
    %1221 = vmatprep.subr.mxu0 0.0
    %1222 = vmatpush1.xpose.msra.mxu0 0.0
    %1223 = vmatprep.subr.mxu0 0.0
    %1224 = vmatpush1.xpose.msra.mxu0 0.0
    %1225 = vmatprep.subr.mxu0 0.0
    %1226 = vmatpush1.xpose.msra.mxu0 0.0
    %1227 = vmatprep.subr.mxu0 0.0
    %1228 = vmatpush1.xpose.msra.mxu0 0.0
    %1229 = vmatprep.subr.mxu0 0.0
    %1230 = vmatpush1.xpose.msra.mxu0 0.0
    %1231 = vmatprep.subr.mxu0 0.0
    %1232 = vmatpush1.xpose.msra.mxu0 0.0
    %1233 = vmatprep.subr.mxu0 0.0
    %1234 = vmatpush1.xpose.msra.mxu0 0.0
    %1235 = vmatprep.subr.mxu0 0.0
    %1236 = vmatpush1.xpose.msra.mxu0 %v1205
    %1237 = vmatprep.subr.mxu0 0.0
    %1238 = vmatpush1.xpose.msra.mxu0 %v1203
    %1239 = vmatprep.subr.mxu0 0.0
    %1240 = vmatpush2.xpose.msra.mxu0 0.0
    %1241 = vmatprep.subr.mxu0 0.0
    %1242 = vmatpush2.xpose.msra.mxu0 0.0
    %1243 = vmatprep.subr.mxu0 0.0
    %1244 = vmatpush2.xpose.msra.mxu0 0.0
    %1245 = vmatprep.subr.mxu0 0.0
    %1246 = vmatpush2.xpose.msra.mxu0 0.0
    %1247 = vmatprep.subr.mxu0 0.0
    %1248 = vmatpush2.xpose.msra.mxu0 0.0
    %1249 = vmatprep.subr.mxu0 0.0
    %1250 = vmatpush2.xpose.msra.mxu0 0.0
    %1251 = vmatprep.subr.mxu0 0.0
    %1252 = vmatpush2.xpose.msra.mxu0 0.0
    %1253 = vmatprep.subr.mxu0 0.0
    %1254 = vmatpush2.xpose.msra.mxu0 0.0
    %1255 = vmatprep.subr.mxu0 0.0
    %1256 = vmatpush2.xpose.msra.mxu0 0.0
    %1257 = vmatprep.subr.mxu0 0.0
    %1258 = vmatpush2.xpose.msra.mxu0 0.0
    %1259 = vmatprep.subr.mxu0 0.0
    %1260 = vmatpush2.xpose.msra.mxu0 0.0
    %1261 = vmatprep.subr.mxu0 0.0
    %1262 = vmatpush2.xpose.msra.mxu0 0.0
    %1263 = vmatprep.subr.mxu0 0.0
    %1264 = vmatpush2.xpose.msra.mxu0 0.0
    %1265 = vmatprep.subr.mxu0 0.0
    %1266 = vmatpush2.xpose.msra.mxu0 0.0
    %1267 = vmatprep.subr.mxu0 0.0
    %1268 = vmatpush2.xpose.msra.mxu0 0.0
    %1269 = vmatprep.subr.mxu0 0.0
    %1270 = vmatpush2.xpose.msra.mxu0 0.0
    %1271 = vmatprep.mubr.f32.mxu0 0.0
    %1272 = vmatmul.mubr.f32.gmra.mxu0 %v1199
    %v1273 = vpop.f32.mrf.mxu0
    %v1274 = vadd.f32 %v87, %v1273
    %v1275 = vpop.f32.mrf.mxu0
    %1276 = vmatprep.mubr.f32.mxu0 0.0
    %1277 = vmatmul.mubr.f32.gmra.mxu0 %v1201
    %v1278 = vpop.f32.mrf.mxu0
    %v1279 = vadd.f32 %v88, %v1278
    %v1280 = vpop.f32.mrf.mxu0
    %1281 = vdwg.mxu0
    %v1282 = vsel %vm164, %v1274, -inf
    %1283 = vmax.xlane.f32.xlu0 %v1282
    %v1284 = vpop.xlane.xlu0 %1283
    %v1285 = vsel %vm164, %v1279, -inf
    %1286 = vmax.xlane.f32.xlu0 %v1285
    %v1287 = vpop.xlane.xlu0 %1286
    %v1288 = vsub.f32 %v1274, %v1284
    %v1289 = vsub.f32 %v1279, %v1287
    %v1290 = vmul.f32 %v1288, 1.442695
    %v1291 = vpow.pop %v1290
    %v1292 = vmul.f32 %v1289, 1.442695
    %v1293 = vpow.pop %v1292
    %v1294 = vsel %vm164, %v1291, 0.0
    %1295 = vadd.xlane.f32.xlu0 %v1294
    %v1296 = vpop.xlane.xlu0 %1295
    %v1297 = vsel %vm164, %v1293, 0.0
    %1298 = vadd.xlane.f32.xlu0 %v1297
    %v1299 = vpop.xlane.xlu0 %1298
    %v1300 = vrcp.pop %v1296
    %v1301 = vrcp.pop %v1299
    %v1302 = vmul.f32 %v1291, %v1300
    %v1303 = vmul.f32 %v1293, %v1301
    %1304 = vrot.lane.b32.xlu0 %v983, 48
    %v1305 = vpop.permute.xlu0 %1304
    %1306 = vrot.lane.b32.xlu0 %v986, 48
    %v1307 = vpop.permute.xlu0 %1306
    %v1311 = vsel %vm164, %v1302, 0
    %v1314 = vsel %vm164, %v1303, 0
    %1316 = vmatprep.subr.mxu0 0.0
    %1317 = vmatpush1.msra.mxu0 0.0
    %1318 = vmatprep.subr.mxu0 0.0
    %1319 = vmatpush1.msra.mxu0 0.0
    %1320 = vmatprep.subr.mxu0 0.0
    %1321 = vmatpush1.msra.mxu0 0.0
    %1322 = vmatprep.subr.mxu0 0.0
    %1323 = vmatpush1.msra.mxu0 0.0
    %1324 = vmatprep.subr.mxu0 0.0
    %1325 = vmatpush1.msra.mxu0 0.0
    %1326 = vmatprep.subr.mxu0 0.0
    %1327 = vmatpush1.msra.mxu0 0.0
    %1328 = vmatprep.subr.mxu0 0.0
    %1329 = vmatpush1.msra.mxu0 0.0
    %1330 = vmatprep.subr.mxu0 0.0
    %1331 = vmatpush1.msra.mxu0 0.0
    %1332 = vmatprep.subr.mxu0 0.0
    %1333 = vmatpush1.msra.mxu0 0.0
    %1334 = vmatprep.subr.mxu0 0.0
    %1335 = vmatpush1.msra.mxu0 0.0
    %1336 = vmatprep.subr.mxu0 0.0
    %1337 = vmatpush1.msra.mxu0 0.0
    %1338 = vmatprep.subr.mxu0 0.0
    %1339 = vmatpush1.msra.mxu0 0.0
    %1340 = vmatprep.subr.mxu0 0.0
    %1341 = vmatpush1.msra.mxu0 0.0
    %1342 = vmatprep.subr.mxu0 0.0
    %1343 = vmatpush1.msra.mxu0 0.0
    %1344 = vmatprep.subr.mxu0 0.0
    %1345 = vmatpush1.msra.mxu0 %v1307
    %1346 = vmatprep.subr.mxu0 0.0
    %1347 = vmatpush1.msra.mxu0 %v1305
    %1348 = vmatprep.subr.mxu0 0.0
    %1349 = vmatpush2.msra.mxu0 0.0
    %1350 = vmatprep.subr.mxu0 0.0
    %1351 = vmatpush2.msra.mxu0 0.0
    %1352 = vmatprep.subr.mxu0 0.0
    %1353 = vmatpush2.msra.mxu0 0.0
    %1354 = vmatprep.subr.mxu0 0.0
    %1355 = vmatpush2.msra.mxu0 0.0
    %1356 = vmatprep.subr.mxu0 0.0
    %1357 = vmatpush2.msra.mxu0 0.0
    %1358 = vmatprep.subr.mxu0 0.0
    %1359 = vmatpush2.msra.mxu0 0.0
    %1360 = vmatprep.subr.mxu0 0.0
    %1361 = vmatpush2.msra.mxu0 0.0
    %1362 = vmatprep.subr.mxu0 0.0
    %1363 = vmatpush2.msra.mxu0 0.0
    %1364 = vmatprep.subr.mxu0 0.0
    %1365 = vmatpush2.msra.mxu0 0.0
    %1366 = vmatprep.subr.mxu0 0.0
    %1367 = vmatpush2.msra.mxu0 0.0
    %1368 = vmatprep.subr.mxu0 0.0
    %1369 = vmatpush2.msra.mxu0 0.0
    %1370 = vmatprep.subr.mxu0 0.0
    %1371 = vmatpush2.msra.mxu0 0.0
    %1372 = vmatprep.subr.mxu0 0.0
    %1373 = vmatpush2.msra.mxu0 0.0
    %1374 = vmatprep.subr.mxu0 0.0
    %1375 = vmatpush2.msra.mxu0 0.0
    %1376 = vmatprep.subr.mxu0 0.0
    %1377 = vmatpush2.msra.mxu0 0.0
    %1378 = vmatprep.subr.mxu0 0.0
    %1379 = vmatpush2.msra.mxu0 0.0
    %1380 = vmatprep.mubr.f32.mxu0 0.0
    %1381 = vmatmul.mubr.f32.gmra.mxu0 %v1311
    %v1382 = vpop.f32.mrf.mxu0
    %v1383 = vadd.f32 0.0, %v1382
    %v1384 = vpop.f32.mrf.mxu0
    %1385 = vmatprep.mubr.f32.mxu0 0.0
    %1386 = vmatmul.mubr.f32.gmra.mxu0 %v1314
    %v1387 = vpop.f32.mrf.mxu0
    %v1388 = vadd.f32 0.0, %v1387
    %v1389 = vpop.f32.mrf.mxu0
    %1390 = vdwg.mxu0
    %v1391 = vpack.c.bf16 %v1388, %v1383
    %v1392 = vld [vmem:[%s1188 + $0x8] sm:$0xf]
    %v1393 = vld [vmem:[%s1188 + $0xc] sm:$0xf]
    %v1396 = vunpack.c.l.b16 %v1392
    %v1397 = vunpack.c.l.b16 %v1393
    %v1398 = vpack.c.b16 %v1397, %v1396
    %v1401 = vsel %vm164, %v1391, 0
    %1403 = vmatprep.subr.bf16.mxu0 0
    %1404 = vmatpush1.bf16.msra.mxu0 0
    %1405 = vmatprep.subr.bf16.mxu0 0
    %1406 = vmatpush1.bf16.msra.mxu0 0
    %1407 = vmatprep.subr.bf16.mxu0 0
    %1408 = vmatpush1.bf16.msra.mxu0 0
    %1409 = vmatprep.subr.bf16.mxu0 0
    %1410 = vmatpush1.bf16.msra.mxu0 0
    %1411 = vmatprep.subr.bf16.mxu0 0
    %1412 = vmatpush1.bf16.msra.mxu0 0
    %1413 = vmatprep.subr.bf16.mxu0 0
    %1414 = vmatpush1.bf16.msra.mxu0 0
    %1415 = vmatprep.subr.bf16.mxu0 0
    %1416 = vmatpush1.bf16.msra.mxu0 0
    %1417 = vmatprep.subr.bf16.mxu0 0
    %1418 = vmatpush1.bf16.msra.mxu0 %v1398
    %1419 = vmatprep.subr.bf16.mxu0 0
    %1420 = vmatpush2.bf16.msra.mxu0 0
    %1421 = vmatprep.subr.bf16.mxu0 0
    %1422 = vmatpush2.bf16.msra.mxu0 0
    %1423 = vmatprep.subr.bf16.mxu0 0
    %1424 = vmatpush2.bf16.msra.mxu0 0
    %1425 = vmatprep.subr.bf16.mxu0 0
    %1426 = vmatpush2.bf16.msra.mxu0 0
    %1427 = vmatprep.subr.bf16.mxu0 0
    %1428 = vmatpush2.bf16.msra.mxu0 0
    %1429 = vmatprep.subr.bf16.mxu0 0
    %1430 = vmatpush2.bf16.msra.mxu0 0
    %1431 = vmatprep.subr.bf16.mxu0 0
    %1432 = vmatpush2.bf16.msra.mxu0 0
    %1433 = vmatprep.subr.bf16.mxu0 0
    %1434 = vmatpush2.bf16.msra.mxu0 0
    %1435 = vmatprep.mubr.bf16.mxu0 0
    %1436 = vmatmul.mubr.bf16.gmra.mxu0 %v1401
    %v1437 = vpop.f32.mrf.mxu0
    %v1438 = vadd.f32 0.0, %v1437
    %v1439 = vpop.f32.mrf.mxu0
    %v1440 = vpop.f32.mrf.mxu0
    %v1441 = vadd.f32 0.0, %v1440
    %v1442 = vpop.f32.mrf.mxu0
    %1443 = vdwg.mxu0
    %v1446 = vunpack.c.l.b16 %v1189
    %v1447 = vunpack.c.l.b16 %v1190
    %v1448 = vpack.c.b16 %v1447, %v1446
    %v1451 = vsel %vm164, %v1187, 0
    %1453 = vmatprep.subr.bf16.mxu0 0
    %1454 = vmatpush1.bf16.msra.mxu0 0
    %1455 = vmatprep.subr.bf16.mxu0 0
    %1456 = vmatpush1.bf16.msra.mxu0 0
    %1457 = vmatprep.subr.bf16.mxu0 0
    %1458 = vmatpush1.bf16.msra.mxu0 0
    %1459 = vmatprep.subr.bf16.mxu0 0
    %1460 = vmatpush1.bf16.msra.mxu0 0
    %1461 = vmatprep.subr.bf16.mxu0 0
    %1462 = vmatpush1.bf16.msra.mxu0 0
    %1463 = vmatprep.subr.bf16.mxu0 0
    %1464 = vmatpush1.bf16.msra.mxu0 0
    %1465 = vmatprep.subr.bf16.mxu0 0
    %1466 = vmatpush1.bf16.msra.mxu0 0
    %1467 = vmatprep.subr.bf16.mxu0 0
    %1468 = vmatpush1.bf16.msra.mxu0 %v1448
    %1469 = vmatprep.subr.bf16.mxu0 0
    %1470 = vmatpush2.bf16.msra.mxu0 0
    %1471 = vmatprep.subr.bf16.mxu0 0
    %1472 = vmatpush2.bf16.msra.mxu0 0
    %1473 = vmatprep.subr.bf16.mxu0 0
    %1474 = vmatpush2.bf16.msra.mxu0 0
    %1475 = vmatprep.subr.bf16.mxu0 0
    %1476 = vmatpush2.bf16.msra.mxu0 0
    %1477 = vmatprep.subr.bf16.mxu0 0
    %1478 = vmatpush2.bf16.msra.mxu0 0
    %1479 = vmatprep.subr.bf16.mxu0 0
    %1480 = vmatpush2.bf16.msra.mxu0 0
    %1481 = vmatprep.subr.bf16.mxu0 0
    %1482 = vmatpush2.bf16.msra.mxu0 0
    %1483 = vmatprep.subr.bf16.mxu0 0
    %1484 = vmatpush2.bf16.msra.mxu0 0
    %1485 = vmatprep.mubr.bf16.mxu0 0
    %1486 = vmatmul.mubr.bf16.gmra.mxu0 %v1451
    %v1487 = vpop.f32.mrf.mxu0
    %v1488 = vadd.f32 %v1438, %v1487
    %v1489 = vpop.f32.mrf.mxu0
    %v1490 = vpop.f32.mrf.mxu0
    %v1491 = vadd.f32 %v1441, %v1490
    %v1492 = vpop.f32.mrf.mxu0
    %1493 = vdwg.mxu0
    %v1494 = vlaneseq
    %v1495 = vshrl.u32 %v1494, 7
    %v1496 = vsub.s32 0, %v1495
    %v1497 = vrot.slane %v918, %v1496
    %v1498 = vadd.f32 %v1488, %v1497
    %v1499 = vadd.f32 %v1491, %v1497
    %v1500 = vadd.f32 %v1498, %v915
    %v1501 = vadd.f32 %v1499, %v916
    %v1502 = vsel %vm47, %v1500, 0.0
    %1503 = vadd.xlane.f32.xlu0 %v1502
    %v1504 = vpop.xlane.xlu0 %1503
    %v1505 = vsel %vm47, %v1501, 0.0
    %1506 = vadd.xlane.f32.xlu0 %v1505
    %v1507 = vpop.xlane.xlu0 %1506
    %v1508 = vmul.f32 %v1504, %v54
    %v1509 = vmul.f32 %v1507, %v54
    %v1510 = vsub.f32 %v1500, %v1508
    %v1511 = vsub.f32 %v1501, %v1509
    %v1512 = vmul.f32 %v1510, %v1510
    %v1513 = vmul.f32 %v1511, %v1511
    %v1514 = vsel %vm47, %v1512, 0.0
    %1515 = vadd.xlane.f32.xlu0 %v1514
    %v1516 = vpop.xlane.xlu0 %1515
    %v1517 = vsel %vm47, %v1513, 0.0
    %1518 = vadd.xlane.f32.xlu0 %v1517
    %v1519 = vpop.xlane.xlu0 %1518
    %v1520 = vmul.f32 %v1516, %v54
    %v1521 = vmul.f32 %v1519, %v54
    %v1522 = vadd.f32 %v1520, 1e-12
    %v1523 = vadd.f32 %v1521, 1e-12
    %v1524 = vrsqrt.pop %v1522
    %v1525 = vrsqrt.pop %v1523
    %v1526 = vmul.f32 %v1510, %v1524
    %v1527 = vmul.f32 %v1511, %v1525
    %v1528 = vlaneseq
    %v1529 = vshrl.u32 %v1528, 7
    %v1530 = vsub.s32 1, %v1529
    %v1531 = vrot.slane %v918, %v1530
    %v1532 = vmul.f32 %v1526, %v1531
    %v1533 = vmul.f32 %v1527, %v1531
    %v1534 = vlaneseq
    %v1535 = vshrl.u32 %v1534, 7
    %v1536 = vsub.s32 2, %v1535
    %v1537 = vrot.slane %v918, %v1536
    %v1538 = vadd.f32 %v1532, %v1537
    %v1539 = vadd.f32 %v1533, %v1537
    %v1540 = vpack.c.bf16 %v1539, %v1538
    %s1541 = scalar_lea.vmem %s6, 16
    %v1542 = vld [vmem:[%s1541] sm:$0xf]
    %v1543 = vld [vmem:[%s1541 + $0x4] sm:$0xf]
    %v1544 = vld [vmem:[%s1541 + $0x8] sm:$0xf]
    %v1545 = vld [vmem:[%s1541 + $0xc] sm:$0xf]
    %s1546 = scalar_lea.vmem %s7, 1
    %v1547 = vld [vmem:[%s1546] sm:$0x1]
    %v1549 = vlaneseq
    %v1550 = vshrl.u32 %v1549, 7
    %v1551 = vsub.s32 0, %v1550
    %v1552 = vrot.slane %v1547, %v1551
    %v1558 = vunpack.c.l.b16 %v1542
    %v1559 = vunpack.c.l.b16 %v1543
    %v1560 = vunpack.c.l.b16 %v1544
    %v1561 = vunpack.c.l.b16 %v1545
    %v1562 = vpack.c.b16 %v1559, %v1558
    %v1563 = vpack.c.b16 %v1561, %v1560
    %v1567 = vsel %vm47, %v1540, 0
    %1569 = vmatprep.subr.bf16.mxu0 0
    %1570 = vmatpush1.bf16.msra.mxu0 0
    %1571 = vmatprep.subr.bf16.mxu0 0
    %1572 = vmatpush1.bf16.msra.mxu0 0
    %1573 = vmatprep.subr.bf16.mxu0 0
    %1574 = vmatpush1.bf16.msra.mxu0 0
    %1575 = vmatprep.subr.bf16.mxu0 0
    %1576 = vmatpush1.bf16.msra.mxu0 0
    %1577 = vmatprep.subr.bf16.mxu0 0
    %1578 = vmatpush1.bf16.msra.mxu0 0
    %1579 = vmatprep.subr.bf16.mxu0 0
    %1580 = vmatpush1.bf16.msra.mxu0 0
    %1581 = vmatprep.subr.bf16.mxu0 0
    %1582 = vmatpush1.bf16.msra.mxu0 %v1563
    %1583 = vmatprep.subr.bf16.mxu0 0
    %1584 = vmatpush1.bf16.msra.mxu0 %v1562
    %1585 = vmatprep.subr.bf16.mxu0 0
    %1586 = vmatpush2.bf16.msra.mxu0 0
    %1587 = vmatprep.subr.bf16.mxu0 0
    %1588 = vmatpush2.bf16.msra.mxu0 0
    %1589 = vmatprep.subr.bf16.mxu0 0
    %1590 = vmatpush2.bf16.msra.mxu0 0
    %1591 = vmatprep.subr.bf16.mxu0 0
    %1592 = vmatpush2.bf16.msra.mxu0 0
    %1593 = vmatprep.subr.bf16.mxu0 0
    %1594 = vmatpush2.bf16.msra.mxu0 0
    %1595 = vmatprep.subr.bf16.mxu0 0
    %1596 = vmatpush2.bf16.msra.mxu0 0
    %1597 = vmatprep.subr.bf16.mxu0 0
    %1598 = vmatpush2.bf16.msra.mxu0 0
    %1599 = vmatprep.subr.bf16.mxu0 0
    %1600 = vmatpush2.bf16.msra.mxu0 0
    %1601 = vmatprep.mubr.bf16.mxu0 0
    %1602 = vmatmul.mubr.bf16.gmra.mxu0 %v1567
    %v1603 = vpop.f32.mrf.mxu0
    %v1604 = vadd.f32 %v1552, %v1603
    %v1605 = vpop.f32.mrf.mxu0
    %v1606 = vpop.f32.mrf.mxu0
    %v1607 = vadd.f32 %v1552, %v1606
    %v1608 = vpop.f32.mrf.mxu0
    %1609 = vdwg.mxu0
    %v1610 = vmul.f32 %v1604, %v1604
    %v1611 = vmul.f32 %v1607, %v1607
    %v1612 = vmul.f32 %v1604, %v1610
    %v1613 = vmul.f32 %v1607, %v1611
    %v1614 = vmul.f32 %v1612, 0.044715
    %v1615 = vmul.f32 %v1613, 0.044715
    %v1616 = vadd.f32 %v1604, %v1614
    %v1617 = vadd.f32 %v1607, %v1615
    %v1618 = vmul.f32 %v1616, 0.7978846
    %v1619 = vmul.f32 %v1617, 0.7978846
    %v1620 = vtanh.pop %v1618
    %v1621 = vtanh.pop %v1619
    %v1622 = vadd.f32 %v1620, 1.0
    %v1623 = vadd.f32 %v1621, 1.0
    %v1624 = vmul.f32 %v1622, 0.5
    %v1625 = vmul.f32 %v1623, 0.5
    %v1626 = vmul.f32 %v1604, %v1624
    %v1627 = vmul.f32 %v1607, %v1625
    %v1628 = vpack.c.bf16 %v1627, %v1626
    %s1629 = scalar_lea.vmem %s8, 32
    %v1630 = vld [vmem:[%s1629] sm:$0xf]
    %v1631 = vld [vmem:[%s1629 + $0x4] sm:$0xf]
    %v1632 = vld [vmem:[%s1629 + $0x8] sm:$0xf]
    %v1633 = vld [vmem:[%s1629 + $0xc] sm:$0xf]
    %v1634 = vld [vmem:[%s1629 + $0x10] sm:$0xf]
    %v1635 = vld [vmem:[%s1629 + $0x14] sm:$0xf]
    %v1636 = vld [vmem:[%s1629 + $0x18] sm:$0xf]
    %v1637 = vld [vmem:[%s1629 + $0x1c] sm:$0xf]
    %v1638 = vlaneseq
    %v1639 = vshrl.u32 %v1638, 7
    %v1640 = vsub.s32 3, %v1639
    %v1641 = vrot.slane %v918, %v1640
    %v1650 = vunpack.c.l.b16 %v1630
    %v1651 = vunpack.c.l.b16 %v1631
    %v1652 = vunpack.c.l.b16 %v1632
    %v1653 = vunpack.c.l.b16 %v1633
    %v1654 = vunpack.c.l.b16 %v1634
    %v1655 = vunpack.c.l.b16 %v1635
    %v1656 = vunpack.c.l.b16 %v1636
    %v1657 = vunpack.c.l.b16 %v1637
    %v1658 = vpack.c.b16 %v1651, %v1650
    %v1659 = vpack.c.b16 %v1653, %v1652
    %v1660 = vpack.c.b16 %v1655, %v1654
    %v1661 = vpack.c.b16 %v1657, %v1656
    %v1667 = vsel %vm832, %v1628, 0
    %1669 = vmatprep.subr.bf16.mxu0 0
    %1670 = vmatpush1.bf16.msra.mxu0 0
    %1671 = vmatprep.subr.bf16.mxu0 0
    %1672 = vmatpush1.bf16.msra.mxu0 0
    %1673 = vmatprep.subr.bf16.mxu0 0
    %1674 = vmatpush1.bf16.msra.mxu0 0
    %1675 = vmatprep.subr.bf16.mxu0 0
    %1676 = vmatpush1.bf16.msra.mxu0 0
    %1677 = vmatprep.subr.bf16.mxu0 0
    %1678 = vmatpush1.bf16.msra.mxu0 %v1661
    %1679 = vmatprep.subr.bf16.mxu0 0
    %1680 = vmatpush1.bf16.msra.mxu0 %v1660
    %1681 = vmatprep.subr.bf16.mxu0 0
    %1682 = vmatpush1.bf16.msra.mxu0 %v1659
    %1683 = vmatprep.subr.bf16.mxu0 0
    %1684 = vmatpush1.bf16.msra.mxu0 %v1658
    %1685 = vmatprep.subr.bf16.mxu0 0
    %1686 = vmatpush2.bf16.msra.mxu0 0
    %1687 = vmatprep.subr.bf16.mxu0 0
    %1688 = vmatpush2.bf16.msra.mxu0 0
    %1689 = vmatprep.subr.bf16.mxu0 0
    %1690 = vmatpush2.bf16.msra.mxu0 0
    %1691 = vmatprep.subr.bf16.mxu0 0
    %1692 = vmatpush2.bf16.msra.mxu0 0
    %1693 = vmatprep.subr.bf16.mxu0 0
    %1694 = vmatpush2.bf16.msra.mxu0 0
    %1695 = vmatprep.subr.bf16.mxu0 0
    %1696 = vmatpush2.bf16.msra.mxu0 0
    %1697 = vmatprep.subr.bf16.mxu0 0
    %1698 = vmatpush2.bf16.msra.mxu0 0
    %1699 = vmatprep.subr.bf16.mxu0 0
    %1700 = vmatpush2.bf16.msra.mxu0 0
    %1701 = vmatprep.mubr.bf16.mxu0 0
    %1702 = vmatmul.mubr.bf16.gmra.mxu0 %v1667
    %v1703 = vpop.f32.mrf.mxu0
    %v1704 = vadd.f32 %v1641, %v1703
    %v1705 = vpop.f32.mrf.mxu0
    %v1706 = vpop.f32.mrf.mxu0
    %v1707 = vadd.f32 %v1641, %v1706
    %v1708 = vpop.f32.mrf.mxu0
    %1709 = vdwg.mxu0
    %v1710 = vadd.f32 %v1704, %v1538
    %v1711 = vadd.f32 %v1707, %v1539
    %v1712 = vsel %vm47, %v1710, 0.0
    %1713 = vadd.xlane.f32.xlu0 %v1712
    %v1714 = vpop.xlane.xlu0 %1713
    %v1715 = vsel %vm47, %v1711, 0.0
    %1716 = vadd.xlane.f32.xlu0 %v1715
    %v1717 = vpop.xlane.xlu0 %1716
    %v1718 = vmul.f32 %v1714, %v54
    %v1719 = vmul.f32 %v1717, %v54
    %v1720 = vsub.f32 %v1710, %v1718
    %v1721 = vsub.f32 %v1711, %v1719
    %v1722 = vmul.f32 %v1720, %v1720
    %v1723 = vmul.f32 %v1721, %v1721
    %v1724 = vsel %vm47, %v1722, 0.0
    %1725 = vadd.xlane.f32.xlu0 %v1724
    %v1726 = vpop.xlane.xlu0 %1725
    %v1727 = vsel %vm47, %v1723, 0.0
    %1728 = vadd.xlane.f32.xlu0 %v1727
    %v1729 = vpop.xlane.xlu0 %1728
    %v1730 = vmul.f32 %v1726, %v54
    %v1731 = vmul.f32 %v1729, %v54
    %v1732 = vadd.f32 %v1730, 1e-12
    %v1733 = vadd.f32 %v1731, 1e-12
    %v1734 = vrsqrt.pop %v1732
    %v1735 = vrsqrt.pop %v1733
    %v1736 = vmul.f32 %v1720, %v1734
    %v1737 = vmul.f32 %v1721, %v1735
    %v1738 = vlaneseq
    %v1739 = vshrl.u32 %v1738, 7
    %v1740 = vsub.s32 4, %v1739
    %v1741 = vrot.slane %v918, %v1740
    %v1742 = vmul.f32 %v1736, %v1741
    %v1743 = vmul.f32 %v1737, %v1741
    %v1744 = vlaneseq
    %v1745 = vshrl.u32 %v1744, 7
    %v1746 = vsub.s32 5, %v1745
    %v1747 = vrot.slane %v918, %v1746
    %v1748 = vadd.f32 %v1742, %v1747
    %v1749 = vadd.f32 %v1743, %v1747
    %1750 = vst.msk [vmem:[#allocation2] sm:$0xff] %vm47, %v1748
    %1751 = vst.msk [vmem:[#allocation2 + $0x8] sm:$0xff] %vm47, %v1749
    %v1753 = vrot.slane %v1749, 7
    %vm1755 = vcmask 1040384
    %v1756 = vsel %vm1755, %v1748, %v1753
    %v1757 = vpack.c.bf16 %v1756, %v1756
    %v1758 = vld [vmem:[%s10] sm:$0xf]
    %v1759 = vld [vmem:[%s10 + $0x4] sm:$0xf]
    %v1760 = vld [vmem:[%s10 + $0x8] sm:$0xf]
    %v1761 = vld [vmem:[%s10 + $0xc] sm:$0xf]
    %v1762 = vld [vmem:[%s2 + $0x2] sm:$0x1]
    %v1763 = vlaneseq
    %v1764 = vshrl.u32 %v1763, 7
    %v1765 = vsub.s32 0, %v1764
    %v1766 = vrot.slane %v1762, %v1765
    %v1771 = vunpack.c.l.b16 %v1758
    %v1772 = vunpack.c.l.b16 %v1759
    %v1773 = vunpack.c.l.b16 %v1760
    %v1774 = vunpack.c.l.b16 %v1761
    %v1775 = vpack.c.b16 %v1772, %v1771
    %v1776 = vpack.c.b16 %v1774, %v1773
    %v1780 = vsel %vm47, %v1757, 0
    %1782 = vmatprep.subr.bf16.mxu0 0
    %1783 = vmatpush1.bf16.msra.mxu0 0
    %1784 = vmatprep.subr.bf16.mxu0 0
    %1785 = vmatpush1.bf16.msra.mxu0 0
    %1786 = vmatprep.subr.bf16.mxu0 0
    %1787 = vmatpush1.bf16.msra.mxu0 0
    %1788 = vmatprep.subr.bf16.mxu0 0
    %1789 = vmatpush1.bf16.msra.mxu0 0
    %1790 = vmatprep.subr.bf16.mxu0 0
    %1791 = vmatpush1.bf16.msra.mxu0 0
    %1792 = vmatprep.subr.bf16.mxu0 0
    %1793 = vmatpush1.bf16.msra.mxu0 0
    %1794 = vmatprep.subr.bf16.mxu0 0
    %1795 = vmatpush1.bf16.msra.mxu0 %v1776
    %1796 = vmatprep.subr.bf16.mxu0 0
    %1797 = vmatpush1.bf16.msra.mxu0 %v1775
    %1798 = vmatprep.subr.bf16.mxu0 0
    %1799 = vmatpush2.bf16.msra.mxu0 0
    %1800 = vmatprep.subr.bf16.mxu0 0
    %1801 = vmatpush2.bf16.msra.mxu0 0
    %1802 = vmatprep.subr.bf16.mxu0 0
    %1803 = vmatpush2.bf16.msra.mxu0 0
    %1804 = vmatprep.subr.bf16.mxu0 0
    %1805 = vmatpush2.bf16.msra.mxu0 0
    %1806 = vmatprep.subr.bf16.mxu0 0
    %1807 = vmatpush2.bf16.msra.mxu0 0
    %1808 = vmatprep.subr.bf16.mxu0 0
    %1809 = vmatpush2.bf16.msra.mxu0 0
    %1810 = vmatprep.subr.bf16.mxu0 0
    %1811 = vmatpush2.bf16.msra.mxu0 0
    %1812 = vmatprep.subr.bf16.mxu0 0
    %1813 = vmatpush2.bf16.msra.mxu0 0
    %1814 = vmatprep.mubr.bf16.mxu0 0
    %1815 = vmatmul.mubr.bf16.gmra.mxu0 %v1780
    %v1816 = vpop.f32.mrf.mxu0
    %v1817 = vadd.f32 %v1766, %v1816
    %v1818 = vpop.f32.mrf.mxu0
    %v1819 = vpop.f32.mrf.mxu0
    %v1820 = vpop.f32.mrf.mxu0
    %1821 = vdwg.mxu0
    %v1822 = vtanh.pop %v1817
    %vm1823 = vcmask 254976
    %1824 = vst.msk [vmem:[#allocation4] sm:$0x3] %vm1823, %v1822
    // Predicated region
    $region46: #{seq_encoder_forward.1} parent=1 // pred_check
      _
    $region47: #{seq_encoder_forward.1} parent=1 // pred_check_branch
      %1826 = sbr.rel (0) target = $region49
    $region48: #{seq_encoder_forward.1} parent=1 // pred_region
      %s1828 = ssub.s32 256, 256
      %1829 = vsyncadd [#allocation3], %s1828
      %s1830 = sshll.u32 [#allocation2], 4
      %s1831 = int_to_ptr.vmem [resolvable:$true] %s1830
      %1836 = dma.vmem_to_hbm [thread:$0]  %s1831, 256, %s11, [#allocation3], 128, 128, 8
    $region49: #{seq_encoder_forward.1} parent=1 // pred_fallthru
      _
    // Predicated region
    $region50: #{seq_encoder_forward.1} parent=1 // pred_check
      _
    $region51: #{seq_encoder_forward.1} parent=1 // pred_check_branch
      %1838 = sbr.rel (0) target = $region53
    $region52: #{seq_encoder_forward.1} parent=1 // pred_region
      %s1840 = ssub.s32 32, 32
      %1841 = vsyncadd [#allocation5], %s1840
      %s1843 = sshll.u32 [#allocation4], 4
      %s1844 = int_to_ptr.vmem [resolvable:$true] %s1843
      %1846 = dma.vmem_to_hbm [thread:$0]  %s1844, 32, %s12, [#allocation5]
    $region53: #{seq_encoder_forward.1} parent=1 // pred_fallthru
      _
    // Predicated region
    $region54: #{seq_encoder_forward.1} parent=1 // pred_check
      _
    $region55: #{seq_encoder_forward.1} parent=1 // pred_check_branch
      %1848 = sbr.rel (0) target = $region57
    $region56: #{seq_encoder_forward.1} parent=1 // pred_region
      %1849 = dma.done [#allocation3], 256
    $region57: #{seq_encoder_forward.1} parent=1 // pred_fallthru
      _
    // Predicated region
    $region58: #{seq_encoder_forward.1} parent=1 // pred_check
      _
    $region59: #{seq_encoder_forward.1} parent=1 // pred_check_branch
      %1851 = sbr.rel (0) target = $region61
    $region60: #{seq_encoder_forward.1} parent=1 // pred_region
      %1852 = dma.done [#allocation5], 32
    $region61: #{seq_encoder_forward.1} parent=1 // pred_fallthru
      _
    %1853 = vsyncpa [#allocation3], 1
    %1854 = vsyncpa [#allocation5], 1

</llo_original>
